<compile_context>
chip_gen: v5e
topology: v5e:2x2
jax: 0.10.0
libtpu: 0.0.40
codegen_flags: <defaults>
</compile_context>

<pallas_src>
import jax
import jax.numpy as jnp
from jax.experimental import pallas as pl
from jax.experimental.pallas import tpu as pltpu


def mlp_kernel(x_ref, w1_ref, b1_ref, w2_ref, b2_ref, o_ref, h_acc):
    k = pl.program_id(0)

    @pl.when(k == 0)
    def _():
        h_acc[...] = jnp.zeros_like(h_acc)

    # Partial first linear: (B, tk) @ (tk, H), accumulate hidden in f32.
    h_acc[...] += jnp.dot(
        x_ref[...].astype(jnp.bfloat16),
        w1_ref[...],
        preferred_element_type=jnp.float32,
    )

    @pl.when(k == pl.num_programs(0) - 1)
    def _():
        # Bias + ReLU in f32 (v5e VPU has no bf16 path); cast only at dot input.
        h = jnp.maximum(h_acc[...] + b1_ref[...], 0.0)
        # Dropout(0.5): module evaluated in inference mode -> identity.
        # TODO(synk): training-mode dropout (pltpu.prng_random_bits mask) not emitted.
        out = jnp.dot(
            h.astype(jnp.bfloat16),
            w2_ref[...],
            preferred_element_type=jnp.float32,
        )
        o_ref[...] = (out + b2_ref[...]).astype(o_ref.dtype)


def net_forward(x, w1, b1, w2, b2, *, tk=256):
    B, D = x.shape
    H = w1.shape[1]
    C = w2.shape[1]
    assert D % tk == 0, "input_dim must be divisible by the K tile size"
    nk = D // tk

    # Lane-dense class dimension: pad 500 -> 512 (free: VMEM already pads).
    Cp = pl.cdiv(C, 128) * 128

    # Stream weights as bf16 (halves HBM bytes; MXU is natively bf16).
    w1_bf16 = w1.astype(jnp.bfloat16)
    w2_bf16 = jnp.pad(w2.astype(jnp.bfloat16), ((0, 0), (0, Cp - C)))
    b1_2d = b1.reshape(1, H).astype(jnp.float32)
    b2_2d = jnp.pad(b2.reshape(1, C).astype(jnp.float32), ((0, 0), (0, Cp - C)))

    out_padded = pl.pallas_call(
        mlp_kernel,
        out_shape=jax.ShapeDtypeStruct((B, Cp), jnp.float32),
        grid_spec=pltpu.PrefetchScalarGridSpec(
            num_scalar_prefetch=0,
            grid=(nk,),
            in_specs=[
                pl.BlockSpec((B, tk), lambda k: (0, k)),    # x: tile along K
                pl.BlockSpec((tk, H), lambda k: (k, 0)),    # W1: tile along K
                pl.BlockSpec((1, H), lambda k: (0, 0)),     # b1: resident
                pl.BlockSpec((H, Cp), lambda k: (0, 0)),    # W2: resident
                pl.BlockSpec((1, Cp), lambda k: (0, 0)),    # b2: resident
            ],
            out_specs=pl.BlockSpec((B, Cp), lambda k: (0, 0)),
            scratch_shapes=[pltpu.VMEM((B, H), jnp.float32)],  # hidden accumulator
        ),
        compiler_params=pltpu.CompilerParams(
            dimension_semantics=("arbitrary",),
        ),
    )(x, w1_bf16, b1_2d, w2_bf16, b2_2d)

    return out_padded[:, :C]


def reference_forward(x, w1, b1, w2, b2):
    # Mirrors the kernel's precision choices: bf16 matmul operands, f32
    # accumulation and f32 elementwise math.
    q = lambda a: a.astype(jnp.bfloat16).astype(jnp.float32)
    h = jnp.maximum(
        jnp.dot(q(x), q(w1), precision=jax.lax.Precision.HIGHEST) + b1, 0.0
    )
    return jnp.dot(q(h), q(w2), precision=jax.lax.Precision.HIGHEST) + b2


if __name__ == "__main__":
    input_dim, hidden, num_classes = 1024, 1024, 500
    batch = 4

    key = jax.random.PRNGKey(0)
    kx, kw1, kb1, kw2, kb2 = jax.random.split(key, 5)

    x = jax.random.normal(kx, (batch, input_dim), dtype=jnp.float32)
    # Deterministic parameter init (roughly PyTorch's uniform(-1/sqrt(fan_in), +)).
    lim1 = 1.0 / jnp.sqrt(input_dim)
    w1 = jax.random.uniform(kw1, (input_dim, hidden), jnp.float32, -lim1, lim1)
    b1 = jax.random.uniform(kb1, (hidden,), jnp.float32, -lim1, lim1)
    lim2 = 1.0 / jnp.sqrt(hidden)
    w2 = jax.random.uniform(kw2, (hidden, num_classes), jnp.float32, -lim2, lim2)
    b2 = jax.random.uniform(kb2, (num_classes,), jnp.float32, -lim2, lim2)

    out = net_forward(x, w1, b1, w2, b2)
    out = jax.block_until_ready(out)

    ref = reference_forward(x, w1, b1, w2, b2)
    assert out.shape == (batch, num_classes)
    assert jnp.allclose(out, ref, atol=2e-3, rtol=2e-3), float(
        jnp.max(jnp.abs(out - ref))
    )

    print("KERNEL_OK")
</pallas_src>

<mosaic_0001>
module attributes {stable_mosaic.version = 11 : i64} {
  func.func @mlp_kernel(%arg0: i32, %arg1: memref<4x256xf32, #tpu.memory_space<vmem>>, %arg2: memref<256x1024xbf16, #tpu.memory_space<vmem>>, %arg3: memref<1x1024xf32, #tpu.memory_space<vmem>>, %arg4: memref<1024x512xbf16, #tpu.memory_space<vmem>>, %arg5: memref<1x512xf32, #tpu.memory_space<vmem>>, %arg6: memref<4x512xf32, #tpu.memory_space<vmem>>, %arg7: memref<4x1024xf32, #tpu.memory_space<vmem>>) attributes {dimension_semantics = [#tpu.dimension_semantics<arbitrary>], iteration_bounds = array<i64: 4>, scalar_prefetch = 0 : i64, scratch_operands = 1 : i64, tpu.core_type = #tpu.core_type<tc>, window_params = [{transform_indices = @transform_0, window_bounds = array<i64: 4, 256>}, {transform_indices = @transform_1, window_bounds = array<i64: 256, 1024>}, {pipeline_mode = #tpu.pipeline_mode<synchronous>, transform_indices = @transform_2, window_bounds = array<i64: 1, 1024>}, {pipeline_mode = #tpu.pipeline_mode<synchronous>, transform_indices = @transform_3, window_bounds = array<i64: 1024, 512>}, {pipeline_mode = #tpu.pipeline_mode<synchronous>, transform_indices = @transform_4, window_bounds = array<i64: 1, 512>}, {pipeline_mode = #tpu.pipeline_mode<synchronous>, transform_indices = @transform_5, window_bounds = array<i64: 4, 512>}]} {
    %c0_i32 = arith.constant 0 : i32
    %0 = arith.cmpi eq, %arg0, %c0_i32 : i32
    %1 = arith.extui %0 : i1 to i32
    %c0_i32_0 = arith.constant 0 : i32
    %2 = arith.cmpi ne, %1, %c0_i32_0 : i32
    scf.if %2 {
      %cst_9 = arith.constant 0.000000e+00 : f32
      %13 = vector.broadcast %cst_9 : f32 to vector<4x1024xf32>
      %c0_10 = arith.constant 0 : index
      %c0_11 = arith.constant 0 : index
      %14 = vector.load %arg7[%c0_10, %c0_11] : memref<4x1024xf32, #tpu.memory_space<vmem>>, vector<4x1024xf32>
      tpu.vector_store %arg7[%c0_10, %c0_11], %13 {strides = array<i32>} : memref<4x1024xf32, #tpu.memory_space<vmem>>, vector<4x1024xf32>,
    } else {
    }
    %c0 = arith.constant 0 : index
    %c0_1 = arith.constant 0 : index
    %3 = vector.load %arg7[%c0, %c0_1] : memref<4x1024xf32, #tpu.memory_space<vmem>>, vector<4x1024xf32>
    %c0_2 = arith.constant 0 : index
    %c0_3 = arith.constant 0 : index
    %4 = vector.load %arg1[%c0_2, %c0_3] : memref<4x256xf32, #tpu.memory_space<vmem>>, vector<4x256xf32>
    %5 = arith.truncf %4 : vector<4x256xf32> to vector<4x256xbf16>
    %c0_4 = arith.constant 0 : index
    %c0_5 = arith.constant 0 : index
    %6 = vector.load %arg2[%c0_4, %c0_5] : memref<256x1024xbf16, #tpu.memory_space<vmem>>, vector<256x1024xbf16>
    %cst = arith.constant dense<0.000000e+00> : vector<4x1024xf32>
    %7 = tpu.matmul %5, %6, %cst {dimension_numbers = #tpu.dot_dimension_numbers<[1], [0], [0], [1], [0, 0, 1, 1], [], []>} : vector<4x256xbf16>, vector<256x1024xbf16>, vector<4x1024xf32> -> vector<4x1024xf32>
    %8 = arith.addf %3, %7 : vector<4x1024xf32>
    %c0_6 = arith.constant 0 : index
    %c0_7 = arith.constant 0 : index
    %9 = vector.load %arg7[%c0_6, %c0_7] : memref<4x1024xf32, #tpu.memory_space<vmem>>, vector<4x1024xf32>
    tpu.vector_store %arg7[%c0_6, %c0_7], %8 {strides = array<i32>} : memref<4x1024xf32, #tpu.memory_space<vmem>>, vector<4x1024xf32>,
    %c3_i32 = arith.constant 3 : i32
    %10 = arith.cmpi eq, %arg0, %c3_i32 : i32
    %11 = arith.extui %10 : i1 to i32
    %c0_i32_8 = arith.constant 0 : i32
    %12 = arith.cmpi ne, %11, %c0_i32_8 : i32
    scf.if %12 {
      %c0_9 = arith.constant 0 : index
      %c0_10 = arith.constant 0 : index
      %13 = vector.load %arg7[%c0_9, %c0_10] : memref<4x1024xf32, #tpu.memory_space<vmem>>, vector<4x1024xf32>
      %c0_11 = arith.constant 0 : index
      %c0_12 = arith.constant 0 : index
      %14 = vector.load %arg3[%c0_11, %c0_12] : memref<1x1024xf32, #tpu.memory_space<vmem>>, vector<1x1024xf32>
      %15 = vector.broadcast %14 : vector<1x1024xf32> to vector<4x1024xf32>
      %16 = arith.addf %13, %15 : vector<4x1024xf32>
      %cst_13 = arith.constant 0.000000e+00 : f32
      %17 = vector.broadcast %cst_13 : f32 to vector<4x1024xf32>
      %18 = arith.maximumf %16, %17 : vector<4x1024xf32>
      %19 = arith.truncf %18 : vector<4x1024xf32> to vector<4x1024xbf16>
      %c0_14 = arith.constant 0 : index
      %c0_15 = arith.constant 0 : index
      %20 = vector.load %arg4[%c0_14, %c0_15] : memref<1024x512xbf16, #tpu.memory_space<vmem>>, vector<1024x512xbf16>
      %cst_16 = arith.constant dense<0.000000e+00> : vector<4x512xf32>
      %21 = tpu.matmul %19, %20, %cst_16 {dimension_numbers = #tpu.dot_dimension_numbers<[1], [0], [0], [1], [0, 0, 1, 1], [], []>} : vector<4x1024xbf16>, vector<1024x512xbf16>, vector<4x512xf32> -> vector<4x512xf32>
      %c0_17 = arith.constant 0 : index
      %c0_18 = arith.constant 0 : index
      %22 = vector.load %arg5[%c0_17, %c0_18] : memref<1x512xf32, #tpu.memory_space<vmem>>, vector<1x512xf32>
      %23 = vector.broadcast %22 : vector<1x512xf32> to vector<4x512xf32>
      %24 = arith.addf %21, %23 : vector<4x512xf32>
      %c0_19 = arith.constant 0 : index
      %c0_20 = arith.constant 0 : index
      %25 = vector.load %arg6[%c0_19, %c0_20] : memref<4x512xf32, #tpu.memory_space<vmem>>, vector<4x512xf32>
      tpu.vector_store %arg6[%c0_19, %c0_20], %24 {strides = array<i32>} : memref<4x512xf32, #tpu.memory_space<vmem>>, vector<4x512xf32>,
    } else {
    }
    return
  }
  func.func @transform_0(%arg0: i32) -> (i32, i32) {
    %c0_i32 = arith.constant 0 : i32
    %c0_i32_0 = arith.constant 0 : i32
    return %c0_i32, %arg0 : i32, i32
  }
  func.func @transform_1(%arg0: i32) -> (i32, i32) {
    %c0_i32 = arith.constant 0 : i32
    %c0_i32_0 = arith.constant 0 : i32
    return %arg0, %c0_i32 : i32, i32
  }
  func.func @transform_2(%arg0: i32) -> (i32, i32) {
    %c0_i32 = arith.constant 0 : i32
    %c0_i32_0 = arith.constant 0 : i32
    %c0_i32_1 = arith.constant 0 : i32
    return %c0_i32, %c0_i32_0 : i32, i32
  }
  func.func @transform_3(%arg0: i32) -> (i32, i32) {
    %c0_i32 = arith.constant 0 : i32
    %c0_i32_0 = arith.constant 0 : i32
    %c0_i32_1 = arith.constant 0 : i32
    return %c0_i32, %c0_i32_0 : i32, i32
  }
  func.func @transform_4(%arg0: i32) -> (i32, i32) {
    %c0_i32 = arith.constant 0 : i32
    %c0_i32_0 = arith.constant 0 : i32
    %c0_i32_1 = arith.constant 0 : i32
    return %c0_i32, %c0_i32_0 : i32, i32
  }
  func.func @transform_5(%arg0: i32) -> (i32, i32) {
    %c0_i32 = arith.constant 0 : i32
    %c0_i32_0 = arith.constant 0 : i32
    %c0_i32_1 = arith.constant 0 : i32
    return %c0_i32, %c0_i32_0 : i32, i32
  }
}

</mosaic_0001>

<llo_original>
// kernel: tpu_custom_call.1
$region0: #{tpu_custom_call.1}
  #allocation0 [shape = 'u32[]', space=smem, size = 0x4, offset = 0x4, fixed_abs, tag = 'smem constant byte address 0x4 - core index']
  #allocation1 [shape = 'u32[72,128]{1,0:T(1,128)}', space=vmem, size = 0x9000, scoped, tag = 'internal scratch']
  #allocation2 [shape = 'f32[4,1024]{1,0:T(4,128)}', space=vmem, size = 0x4000, scoped, tag = 'scratch operand']
  %s0 = inlined_call_operand.hbm [shape: f32[4,1024], index: 0, kind: input, shape index: {}]
  %s1 = inlined_call_operand.hbm [shape: bf16[1024,1024], index: 1, kind: input, shape index: {}]
  %s2 = inlined_call_operand.hbm [shape: f32[1,1024], index: 2, kind: input, shape index: {}]
  %s3 = inlined_call_operand.hbm [shape: bf16[1024,512], index: 3, kind: input, shape index: {}]
  %s4 = inlined_call_operand.hbm [shape: f32[1,512], index: 4, kind: input, shape index: {}]
  %s5 = inlined_call_operand.hbm [shape: f32[4,512], index: 5, kind: output, shape index: {}]
  %s6 = sld [smem:[#allocation0]]
  $region81: #{tpu_custom_call.1} parent=0
    _
  %s8 = ssub.s32 1, %s6
  %s9 = scalar_select 0, %s8, %s6
  $region1: #{tpu_custom_call.1} parent=0
    #allocation3 [shape = 'u8[8192]{0}', space=vmem, size = 0x2000, scoped, tag = 'input window, operand 0']
    #allocation4 [shape = 's32[2]{0}', space=sflag, size = 0x8, scoped, tag = 'scoped memory for tpu_custom_call.1']
    #allocation5 [shape = 's32[2]{0}', space=sflag, size = 0x8, scoped, tag = 'scoped memory for tpu_custom_call.1']
    #allocation6 [shape = 'u8[1048576]{0}', space=vmem, size = 0x100000, scoped, tag = 'input window, operand 1']
    #allocation7 [shape = 's32[2]{0}', space=sflag, size = 0x8, scoped, tag = 'scoped memory for tpu_custom_call.1']
    #allocation8 [shape = 'u8[4096]{0}', space=vmem, size = 0x1000, scoped, tag = 'input window, operand 2, single buffered']
    #allocation9 [shape = 'u8[1048576]{0}', space=vmem, size = 0x100000, scoped, tag = 'input window, operand 3, single buffered']
    #allocation10 [shape = 's32[1]{0}', space=sflag, size = 0x4, scoped, tag = 'scoped memory for tpu_custom_call.1']
    #allocation11 [shape = 'u8[2048]{0}', space=vmem, size = 0x800, scoped, tag = 'input window, operand 4, single buffered']
    #allocation12 [shape = 'u8[8192]{0}', space=vmem, size = 0x2000, scoped, tag = 'output window, operand 0, single buffered']
    %10 = vsyncpa [#allocation4], 0
    %s11 = scalar_lea.sflag [#allocation4], 1
    %12 = vsyncpa %s11, 0
    %13 = vsyncpa [#allocation7], 0
    %s14 = scalar_lea.sflag [#allocation7], 1
    %15 = vsyncpa %s14, 0
    %16 = vsyncpa [#allocation10], 0
    %17 = vsyncpa [#allocation5], 0
    loop: start=0, step=1, limit=6
    $region2: #{tpu_custom_call.1} parent=1 // loop_pre_header
      _
    $region3: #{tpu_custom_call.1} parent=1 // loop_header
      %s19 = sphi 0, %s23
      %p20 = scmp.ge.s32.totalorder %s19, 6
      %s29 = sphi 0, %s31
      %s32 = sphi 0, %s29
      %s33 = sphi 0, %s32
      %s49 = sphi 0, %s33
      %s55 = sphi 0, %s57
      %s58 = sphi 0, %s55
      %s59 = sphi 0, %s58
      %s75 = sphi 0, %s59
      %s79 = sphi 0, %s79
      %s81 = sphi 0, %s79
      %s82 = sphi 0, %s81
      %s96 = sphi 0, %s82
      %s100 = sphi 0, %s100
      %s102 = sphi 0, %s100
      %s103 = sphi 0, %s102
      %s117 = sphi 0, %s103
      %s121 = sphi 0, %s121
      %s123 = sphi 0, %s121
      %s124 = sphi 0, %s123
      %s138 = sphi 0, %s124
      %s142 = sphi 0, %s142
      %s144 = sphi 0, %s142
      %s145 = sphi 0, %s144
      %s159 = sphi 0, %s145
    $region4: #{tpu_custom_call.1} parent=1 // loop_header_branch
      %22 = sbr.rel (%p20) target = $region8
    $region5: #{tpu_custom_call.1} parent=1 // loop_body
      %s24 = ssub.s32 %s19, 1
      %s25 = ssub.s32 %s19, 2
      %s26 = sadd.s32 %s19, 1
      %s27 = ssub.s32 %s19, %s26
      %p28 = scmp.eq.s32.totalorder %s27, 0
      %s30 = sadd.s32 %s29, 1
      %s31 = scalar_select %p28, %s29, %s30
      %p34 = pneg %p28
      %p35 = scmp.eq.s32.totalorder %s19, 3
      %p36 = por %p34, %p35
      %p37 = scmp.ne.s32.totalorder %s29, %s32
      %p38 = scmp.eq.s32.totalorder %s19, 0
      %p39 = por %p37, %p38
      %p40 = scmp.ne.s32.totalorder %s29, %s32
      %p41 = scmp.eq.s32.totalorder %s24, 3
      %p42 = por %p40, %p41
      %p43 = scmp.ne.s32.totalorder %s32, %s33
      %p44 = scmp.eq.s32.totalorder %s24, 0
      %p45 = por %p43, %p44
      %p46 = scmp.ne.s32.totalorder %s32, %s33
      %p47 = scmp.eq.s32.totalorder %s25, 3
      %p48 = por %p46, %p47
      %p50 = scmp.ne.s32.totalorder %s33, %s49
      %p51 = scmp.eq.s32.totalorder %s25, 0
      %p52 = por %p50, %p51
      %s53 = ssub.s32 %s19, %s26
      %p54 = scmp.eq.s32.totalorder %s53, 0
      %s56 = sadd.s32 %s55, 1
      %s57 = scalar_select %p54, %s55, %s56
      %p60 = pneg %p54
      %p61 = scmp.eq.s32.totalorder %s19, 3
      %p62 = por %p60, %p61
      %p63 = scmp.ne.s32.totalorder %s55, %s58
      %p64 = scmp.eq.s32.totalorder %s19, 0
      %p65 = por %p63, %p64
      %p66 = scmp.ne.s32.totalorder %s55, %s58
      %p67 = scmp.eq.s32.totalorder %s24, 3
      %p68 = por %p66, %p67
      %p69 = scmp.ne.s32.totalorder %s58, %s59
      %p70 = scmp.eq.s32.totalorder %s24, 0
      %p71 = por %p69, %p70
      %p72 = scmp.ne.s32.totalorder %s58, %s59
      %p73 = scmp.eq.s32.totalorder %s25, 3
      %p74 = por %p72, %p73
      %p76 = scmp.ne.s32.totalorder %s59, %s75
      %p77 = scmp.eq.s32.totalorder %s25, 0
      %p78 = por %p76, %p77
      %s80 = sadd.s32 %s79, 1
      %p83 = scmp.eq.s32.totalorder %s19, 3
      %p84 = scmp.ne.s32.totalorder %s79, %s81
      %p85 = scmp.eq.s32.totalorder %s19, 0
      %p86 = por %p84, %p85
      %p87 = scmp.ne.s32.totalorder %s79, %s81
      %p88 = scmp.eq.s32.totalorder %s24, 3
      %p89 = por %p87, %p88
      %p90 = scmp.ne.s32.totalorder %s81, %s82
      %p91 = scmp.eq.s32.totalorder %s24, 0
      %p92 = por %p90, %p91
      %p93 = scmp.ne.s32.totalorder %s81, %s82
      %p94 = scmp.eq.s32.totalorder %s25, 3
      %p95 = por %p93, %p94
      %p97 = scmp.ne.s32.totalorder %s82, %s96
      %p98 = scmp.eq.s32.totalorder %s25, 0
      %p99 = por %p97, %p98
      %s101 = sadd.s32 %s100, 1
      %p104 = scmp.eq.s32.totalorder %s19, 3
      %p105 = scmp.ne.s32.totalorder %s100, %s102
      %p106 = scmp.eq.s32.totalorder %s19, 0
      %p107 = por %p105, %p106
      %p108 = scmp.ne.s32.totalorder %s100, %s102
      %p109 = scmp.eq.s32.totalorder %s24, 3
      %p110 = por %p108, %p109
      %p111 = scmp.ne.s32.totalorder %s102, %s103
      %p112 = scmp.eq.s32.totalorder %s24, 0
      %p113 = por %p111, %p112
      %p114 = scmp.ne.s32.totalorder %s102, %s103
      %p115 = scmp.eq.s32.totalorder %s25, 3
      %p116 = por %p114, %p115
      %p118 = scmp.ne.s32.totalorder %s103, %s117
      %p119 = scmp.eq.s32.totalorder %s25, 0
      %p120 = por %p118, %p119
      %s122 = sadd.s32 %s121, 1
      %p125 = scmp.eq.s32.totalorder %s19, 3
      %p126 = scmp.ne.s32.totalorder %s121, %s123
      %p127 = scmp.eq.s32.totalorder %s19, 0
      %p128 = por %p126, %p127
      %p129 = scmp.ne.s32.totalorder %s121, %s123
      %p130 = scmp.eq.s32.totalorder %s24, 3
      %p131 = por %p129, %p130
      %p132 = scmp.ne.s32.totalorder %s123, %s124
      %p133 = scmp.eq.s32.totalorder %s24, 0
      %p134 = por %p132, %p133
      %p135 = scmp.ne.s32.totalorder %s123, %s124
      %p136 = scmp.eq.s32.totalorder %s25, 3
      %p137 = por %p135, %p136
      %p139 = scmp.ne.s32.totalorder %s124, %s138
      %p140 = scmp.eq.s32.totalorder %s25, 0
      %p141 = por %p139, %p140
      %s143 = sadd.s32 %s142, 1
      %p146 = scmp.eq.s32.totalorder %s19, 3
      %p147 = scmp.ne.s32.totalorder %s142, %s144
      %p148 = scmp.eq.s32.totalorder %s19, 0
      %p149 = por %p147, %p148
      %p150 = scmp.ne.s32.totalorder %s142, %s144
      %p151 = scmp.eq.s32.totalorder %s24, 3
      %p152 = por %p150, %p151
      %p153 = scmp.ne.s32.totalorder %s144, %s145
      %p154 = scmp.eq.s32.totalorder %s24, 0
      %p155 = por %p153, %p154
      %p156 = scmp.ne.s32.totalorder %s144, %s145
      %p157 = scmp.eq.s32.totalorder %s25, 3
      %p158 = por %p156, %p157
      %p160 = scmp.ne.s32.totalorder %s145, %s159
      %p161 = scmp.eq.s32.totalorder %s25, 0
      %p162 = por %p160, %p161
      %p163 = scmp.le.s32.totalorder 1, %s19
      %p164 = scmp.lt.s32.totalorder %s19, 5
      %p165 = pnand %p163, %p164
      %p166 = pneg %p165
      // Predicated region
      $region9: #{tpu_custom_call.1} parent=5 // pred_check
        _
      $region10: #{tpu_custom_call.1} parent=5 // pred_check_branch
        %168 = sbr.rel (%p165) target = $region12
      $region11: #{tpu_custom_call.1} parent=5 // pred_region
        %s169 = ssub.s32 %s19, 1
        // Predicated region
        $region13: #{tpu_custom_call.1} parent=11 // pred_check
          %p170 = pneg %p92
        $region14: #{tpu_custom_call.1} parent=11 // pred_check_branch
          %172 = sbr.rel (%p170) target = $region16
        $region15: #{tpu_custom_call.1} parent=11 // pred_region
          %174 = vsyncadd [#allocation7], 0
          %s176 = sshll.u32 %s2, 4
          %s177 = int_to_ptr.hbm [resolvable:$true] %s176
          %s178 = sshll.u32 [#allocation8], 4
          %s179 = int_to_ptr.vmem [resolvable:$true] %s178
          %181 = dma.hbm_to_vmem [thread:$0]  %s177, 128, %s179, [#allocation7]
        $region16: #{tpu_custom_call.1} parent=11 // pred_fallthru
          _
        // Predicated region
        $region17: #{tpu_custom_call.1} parent=11 // pred_check
          %p182 = pneg %p113
        $region18: #{tpu_custom_call.1} parent=11 // pred_check_branch
          %184 = sbr.rel (%p182) target = $region20
        $region19: #{tpu_custom_call.1} parent=11 // pred_region
          %186 = vsyncadd [#allocation10], 0
          %s187 = sshll.u32 %s3, 4
          %s188 = int_to_ptr.hbm [resolvable:$true] %s187
          %s189 = sshll.u32 [#allocation9], 4
          %s190 = int_to_ptr.vmem [resolvable:$true] %s189
          %195 = dma.hbm_to_vmem [thread:$0]  %s188, 32768, %s190, [#allocation10], 256, 256, 16
        $region20: #{tpu_custom_call.1} parent=11 // pred_fallthru
          _
        // Predicated region
        $region21: #{tpu_custom_call.1} parent=11 // pred_check
          %p196 = pneg %p134
        $region22: #{tpu_custom_call.1} parent=11 // pred_check_branch
          %198 = sbr.rel (%p196) target = $region24
        $region23: #{tpu_custom_call.1} parent=11 // pred_region
          %200 = vsyncadd [#allocation10], 0
          %s202 = sshll.u32 %s4, 4
          %s203 = int_to_ptr.hbm [resolvable:$true] %s202
          %s204 = sshll.u32 [#allocation11], 4
          %s205 = int_to_ptr.vmem [resolvable:$true] %s204
          %207 = dma.hbm_to_vmem [thread:$0]  %s203, 64, %s205, [#allocation10]
        $region24: #{tpu_custom_call.1} parent=11 // pred_fallthru
          _
      $region12: #{tpu_custom_call.1} parent=5 // pred_fallthru
        _
      %p208 = scmp.lt.s32.totalorder %s19, 4
      // Predicated region
      $region25: #{tpu_custom_call.1} parent=5 // pred_check
        %p209 = pneg %p208
      $region26: #{tpu_custom_call.1} parent=5 // pred_check_branch
        %211 = sbr.rel (%p209) target = $region28
      $region27: #{tpu_custom_call.1} parent=5 // pred_region
        // Predicated region
        $region29: #{tpu_custom_call.1} parent=27 // pred_check
          %p212 = pneg %p39
        $region30: #{tpu_custom_call.1} parent=27 // pred_check_branch
          %214 = sbr.rel (%p212) target = $region32
        $region31: #{tpu_custom_call.1} parent=27 // pred_region
          %s215 = sand.u32 %s29, 1
          %s216 = scalar_lea.sflag [#allocation4], %s215
          %s217 = sand.u32 %s29, 1
          %s218 = smul.addr %s217, 8
          %s219 = scalar_lea.vmem [#allocation3], %s218
          %s220 = smul.u32 2, %s19
          %222 = vsyncadd %s216, 0
          %s223 = smul.addr %s220, 4
          %s224 = scalar_lea.hbm %s0, %s223
          %s226 = sshll.u32 %s224, 4
          %s227 = int_to_ptr.hbm [resolvable:$true] %s226
          %s228 = sshll.u32 %s219, 4
          %s229 = int_to_ptr.vmem [resolvable:$true] %s228
          %231 = dma.hbm_to_vmem [thread:$0]  %s227, 128, %s229, %s216
        $region32: #{tpu_custom_call.1} parent=27 // pred_fallthru
          _
        // Predicated region
        $region33: #{tpu_custom_call.1} parent=27 // pred_check
          %p232 = pneg %p65
        $region34: #{tpu_custom_call.1} parent=27 // pred_check_branch
          %234 = sbr.rel (%p232) target = $region36
        $region35: #{tpu_custom_call.1} parent=27 // pred_region
          %s235 = sand.u32 %s19, 1
          %s236 = scalar_lea.sflag [#allocation7], %s235
          %s237 = sand.u32 %s55, 1
          %s238 = smul.addr %s237, 1024
          %s239 = scalar_lea.vmem [#allocation6], %s238
          %s240 = smul.u32 32, %s19
          %242 = vsyncadd %s236, 0
          %s243 = smul.addr %s240, 8
          %s244 = smul.addr %s243, 4
          %s245 = scalar_lea.hbm %s1, %s244
          %s246 = sshll.u32 %s245, 4
          %s247 = int_to_ptr.hbm [resolvable:$true] %s246
          %s248 = sshll.u32 %s239, 4
          %s249 = int_to_ptr.vmem [resolvable:$true] %s248
          %254 = dma.hbm_to_vmem [thread:$0]  %s247, 16384, %s249, %s236, 512, 512, 32
        $region36: #{tpu_custom_call.1} parent=27 // pred_fallthru
          _
      $region28: #{tpu_custom_call.1} parent=5 // pred_fallthru
        _
      %p255 = scmp.le.s32.totalorder 1, %s19
      %p256 = scmp.lt.s32.totalorder %s19, 5
      %p257 = pnand %p255, %p256
      %p258 = pneg %p257
      // Predicated region
      $region37: #{tpu_custom_call.1} parent=5 // pred_check
        _
      $region38: #{tpu_custom_call.1} parent=5 // pred_check_branch
        %260 = sbr.rel (%p257) target = $region40
      $region39: #{tpu_custom_call.1} parent=5 // pred_region
        %s261 = ssub.s32 %s19, 1
        %s262 = sand.u32 %s32, 1
        %s263 = scalar_lea.sflag [#allocation4], %s262
        %s264 = sand.u32 %s32, 1
        %s265 = smul.addr %s264, 8
        %s266 = scalar_lea.vmem [#allocation3], %s265
        // Predicated region
        $region41: #{tpu_custom_call.1} parent=39 // pred_check
          %p267 = pneg %p45
        $region42: #{tpu_custom_call.1} parent=39 // pred_check_branch
          %269 = sbr.rel (%p267) target = $region44
        $region43: #{tpu_custom_call.1} parent=39 // pred_region
          %271 = dma.done %s263, 128
        $region44: #{tpu_custom_call.1} parent=39 // pred_fallthru
          _
        %s272 = sand.u32 %s24, 1
        %s273 = scalar_lea.sflag [#allocation7], %s272
        %s274 = sand.u32 %s58, 1
        %s275 = smul.addr %s274, 1024
        %s276 = scalar_lea.vmem [#allocation6], %s275
        // Predicated region
        $region45: #{tpu_custom_call.1} parent=39 // pred_check
          %p277 = pneg %p71
        $region46: #{tpu_custom_call.1} parent=39 // pred_check_branch
          %279 = sbr.rel (%p277) target = $region48
        $region47: #{tpu_custom_call.1} parent=39 // pred_region
          %281 = dma.done %s273, 16384
        $region48: #{tpu_custom_call.1} parent=39 // pred_fallthru
          _
        // Predicated region
        $region49: #{tpu_custom_call.1} parent=39 // pred_check
          %p282 = pneg %p92
        $region50: #{tpu_custom_call.1} parent=39 // pred_check_branch
          %284 = sbr.rel (%p282) target = $region52
        $region51: #{tpu_custom_call.1} parent=39 // pred_region
          %286 = dma.done [#allocation7], 128
        $region52: #{tpu_custom_call.1} parent=39 // pred_fallthru
          _
        // Predicated region
        $region53: #{tpu_custom_call.1} parent=39 // pred_check
          %p287 = pneg %p113
        $region54: #{tpu_custom_call.1} parent=39 // pred_check_branch
          %289 = sbr.rel (%p287) target = $region56
        $region55: #{tpu_custom_call.1} parent=39 // pred_region
          %291 = dma.done [#allocation10], 32768
        $region56: #{tpu_custom_call.1} parent=39 // pred_fallthru
          _
        // Predicated region
        $region57: #{tpu_custom_call.1} parent=39 // pred_check
          %p292 = pneg %p134
        $region58: #{tpu_custom_call.1} parent=39 // pred_check_branch
          %294 = sbr.rel (%p292) target = $region60
        $region59: #{tpu_custom_call.1} parent=39 // pred_region
          %296 = dma.done [#allocation10], 64
        $region60: #{tpu_custom_call.1} parent=39 // pred_fallthru
          _
        %s297 = sand.u32 %s32, 1
        %s298 = scalar_lea.sflag [#allocation4], %s297
        %s299 = sand.u32 %s32, 1
        %s300 = smul.addr %s299, 8
        %s301 = scalar_lea.vmem [#allocation3], %s300
        %p302 = pneg %p45
        %p303 = pneg %p42
        %s304 = sand.u32 %s24, 1
        %s305 = scalar_lea.sflag [#allocation7], %s304
        %s306 = sand.u32 %s58, 1
        %s307 = smul.addr %s306, 1024
        %s308 = scalar_lea.vmem [#allocation6], %s307
        %p309 = pneg %p71
        %p310 = pneg %p68
        %p311 = pneg %p92
        %p312 = pneg %p89
        %p313 = pneg %p113
        %p314 = pneg %p110
        %p315 = pneg %p134
        %p316 = pneg %p131
        %p317 = pneg %p155
        %p318 = pneg %p152
        %s319 = smul.u32 2, %s24
        %s320 = smul.u32 32, %s24
        %p321 = scmp.eq.s32.totalorder %s24, 0
        // Predicated region
        $region61: #{tpu_custom_call.1} parent=39 // pred_check
          %p322 = pneg %p321
        $region62: #{tpu_custom_call.1} parent=39 // pred_check_branch
          %324 = sbr.rel (%p322) target = $region64
        $region63: #{tpu_custom_call.1} parent=39 // pred_region
          %325 = vst [vmem:[#allocation2] sm:$0xff] 0.0
          %326 = vst [vmem:[#allocation2 + $0x8] sm:$0xff] 0.0
          %327 = vst [vmem:[#allocation2 + $0x10] sm:$0xff] 0.0
          %328 = vst [vmem:[#allocation2 + $0x18] sm:$0xff] 0.0
        $region64: #{tpu_custom_call.1} parent=39 // pred_fallthru
          _
        %v329 = vld [vmem:[#allocation2] sm:$0xff]
        %v330 = vld [vmem:[#allocation2 + $0x8] sm:$0xff]
        %v331 = vld [vmem:[#allocation2 + $0x10] sm:$0xff]
        %v332 = vld [vmem:[#allocation2 + $0x18] sm:$0xff]
        %v333 = vld [vmem:[%s266] sm:$0xff]
        %335 = vst [vmem:[#allocation1] ss:$2 sm:$0xff] %v333
        %v336 = vld.sshfl [vmem:[#allocation1] sm:$0xff pattern:$0x75316420]
        %v337 = vld.sshfl [vmem:[#allocation1 + $0x8] sm:$0xff pattern:$0x75316420]
        %v340 = vpack.c.bf16 %v336, %v336
        %v341 = vpack.c.bf16 %v337, %v337
        %v342 = vld [vmem:[%s276] sm:$0xff]
        %v343 = vld [vmem:[%s276 + $0x8] sm:$0xff]
        %v344 = vld [vmem:[%s276 + $0x10] sm:$0xff]
        %v345 = vld [vmem:[%s276 + $0x18] sm:$0xff]
        %v346 = vld [vmem:[%s276 + $0x20] sm:$0xff]
        %v347 = vld [vmem:[%s276 + $0x28] sm:$0xff]
        %v348 = vld [vmem:[%s276 + $0x30] sm:$0xff]
        %v349 = vld [vmem:[%s276 + $0x38] sm:$0xff]
        %v350 = vld [vmem:[%s276 + $0x40] sm:$0xff]
        %v351 = vld [vmem:[%s276 + $0x48] sm:$0xff]
        %v352 = vld [vmem:[%s276 + $0x50] sm:$0xff]
        %v353 = vld [vmem:[%s276 + $0x58] sm:$0xff]
        %v354 = vld [vmem:[%s276 + $0x60] sm:$0xff]
        %v355 = vld [vmem:[%s276 + $0x68] sm:$0xff]
        %v356 = vld [vmem:[%s276 + $0x70] sm:$0xff]
        %v357 = vld [vmem:[%s276 + $0x78] sm:$0xff]
        %v358 = vld [vmem:[%s276 + $0x80] sm:$0xff]
        %v359 = vld [vmem:[%s276 + $0x88] sm:$0xff]
        %v360 = vld [vmem:[%s276 + $0x90] sm:$0xff]
        %v361 = vld [vmem:[%s276 + $0x98] sm:$0xff]
        %v362 = vld [vmem:[%s276 + $0xa0] sm:$0xff]
        %v363 = vld [vmem:[%s276 + $0xa8] sm:$0xff]
        %v364 = vld [vmem:[%s276 + $0xb0] sm:$0xff]
        %v365 = vld [vmem:[%s276 + $0xb8] sm:$0xff]
        %v366 = vld [vmem:[%s276 + $0xc0] sm:$0xff]
        %v367 = vld [vmem:[%s276 + $0xc8] sm:$0xff]
        %v368 = vld [vmem:[%s276 + $0xd0] sm:$0xff]
        %v369 = vld [vmem:[%s276 + $0xd8] sm:$0xff]
        %v370 = vld [vmem:[%s276 + $0xe0] sm:$0xff]
        %v371 = vld [vmem:[%s276 + $0xe8] sm:$0xff]
        %v372 = vld [vmem:[%s276 + $0xf0] sm:$0xff]
        %v373 = vld [vmem:[%s276 + $0xf8] sm:$0xff]
        %v374 = vld [vmem:[%s276 + $0x100] sm:$0xff]
        %v375 = vld [vmem:[%s276 + $0x108] sm:$0xff]
        %v376 = vld [vmem:[%s276 + $0x110] sm:$0xff]
        %v377 = vld [vmem:[%s276 + $0x118] sm:$0xff]
        %v378 = vld [vmem:[%s276 + $0x120] sm:$0xff]
        %v379 = vld [vmem:[%s276 + $0x128] sm:$0xff]
        %v380 = vld [vmem:[%s276 + $0x130] sm:$0xff]
        %v381 = vld [vmem:[%s276 + $0x138] sm:$0xff]
        %v382 = vld [vmem:[%s276 + $0x140] sm:$0xff]
        %v383 = vld [vmem:[%s276 + $0x148] sm:$0xff]
        %v384 = vld [vmem:[%s276 + $0x150] sm:$0xff]
        %v385 = vld [vmem:[%s276 + $0x158] sm:$0xff]
        %v386 = vld [vmem:[%s276 + $0x160] sm:$0xff]
        %v387 = vld [vmem:[%s276 + $0x168] sm:$0xff]
        %v388 = vld [vmem:[%s276 + $0x170] sm:$0xff]
        %v389 = vld [vmem:[%s276 + $0x178] sm:$0xff]
        %v390 = vld [vmem:[%s276 + $0x180] sm:$0xff]
        %v391 = vld [vmem:[%s276 + $0x188] sm:$0xff]
        %v392 = vld [vmem:[%s276 + $0x190] sm:$0xff]
        %v393 = vld [vmem:[%s276 + $0x198] sm:$0xff]
        %v394 = vld [vmem:[%s276 + $0x1a0] sm:$0xff]
        %v395 = vld [vmem:[%s276 + $0x1a8] sm:$0xff]
        %v396 = vld [vmem:[%s276 + $0x1b0] sm:$0xff]
        %v397 = vld [vmem:[%s276 + $0x1b8] sm:$0xff]
        %v398 = vld [vmem:[%s276 + $0x1c0] sm:$0xff]
        %v399 = vld [vmem:[%s276 + $0x1c8] sm:$0xff]
        %v400 = vld [vmem:[%s276 + $0x1d0] sm:$0xff]
        %v401 = vld [vmem:[%s276 + $0x1d8] sm:$0xff]
        %v402 = vld [vmem:[%s276 + $0x1e0] sm:$0xff]
        %v403 = vld [vmem:[%s276 + $0x1e8] sm:$0xff]
        %v404 = vld [vmem:[%s276 + $0x1f0] sm:$0xff]
        %v405 = vld [vmem:[%s276 + $0x1f8] sm:$0xff]
        %v406 = vld [vmem:[%s276 + $0x200] sm:$0xff]
        %v407 = vld [vmem:[%s276 + $0x208] sm:$0xff]
        %v408 = vld [vmem:[%s276 + $0x210] sm:$0xff]
        %v409 = vld [vmem:[%s276 + $0x218] sm:$0xff]
        %v410 = vld [vmem:[%s276 + $0x220] sm:$0xff]
        %v411 = vld [vmem:[%s276 + $0x228] sm:$0xff]
        %v412 = vld [vmem:[%s276 + $0x230] sm:$0xff]
        %v413 = vld [vmem:[%s276 + $0x238] sm:$0xff]
        %v414 = vld [vmem:[%s276 + $0x240] sm:$0xff]
        %v415 = vld [vmem:[%s276 + $0x248] sm:$0xff]
        %v416 = vld [vmem:[%s276 + $0x250] sm:$0xff]
        %v417 = vld [vmem:[%s276 + $0x258] sm:$0xff]
        %v418 = vld [vmem:[%s276 + $0x260] sm:$0xff]
        %v419 = vld [vmem:[%s276 + $0x268] sm:$0xff]
        %v420 = vld [vmem:[%s276 + $0x270] sm:$0xff]
        %v421 = vld [vmem:[%s276 + $0x278] sm:$0xff]
        %v422 = vld [vmem:[%s276 + $0x280] sm:$0xff]
        %v423 = vld [vmem:[%s276 + $0x288] sm:$0xff]
        %v424 = vld [vmem:[%s276 + $0x290] sm:$0xff]
        %v425 = vld [vmem:[%s276 + $0x298] sm:$0xff]
        %v426 = vld [vmem:[%s276 + $0x2a0] sm:$0xff]
        %v427 = vld [vmem:[%s276 + $0x2a8] sm:$0xff]
        %v428 = vld [vmem:[%s276 + $0x2b0] sm:$0xff]
        %v429 = vld [vmem:[%s276 + $0x2b8] sm:$0xff]
        %v430 = vld [vmem:[%s276 + $0x2c0] sm:$0xff]
        %v431 = vld [vmem:[%s276 + $0x2c8] sm:$0xff]
        %v432 = vld [vmem:[%s276 + $0x2d0] sm:$0xff]
        %v433 = vld [vmem:[%s276 + $0x2d8] sm:$0xff]
        %v434 = vld [vmem:[%s276 + $0x2e0] sm:$0xff]
        %v435 = vld [vmem:[%s276 + $0x2e8] sm:$0xff]
        %v436 = vld [vmem:[%s276 + $0x2f0] sm:$0xff]
        %v437 = vld [vmem:[%s276 + $0x2f8] sm:$0xff]
        %v438 = vld [vmem:[%s276 + $0x300] sm:$0xff]
        %v439 = vld [vmem:[%s276 + $0x308] sm:$0xff]
        %v440 = vld [vmem:[%s276 + $0x310] sm:$0xff]
        %v441 = vld [vmem:[%s276 + $0x318] sm:$0xff]
        %v442 = vld [vmem:[%s276 + $0x320] sm:$0xff]
        %v443 = vld [vmem:[%s276 + $0x328] sm:$0xff]
        %v444 = vld [vmem:[%s276 + $0x330] sm:$0xff]
        %v445 = vld [vmem:[%s276 + $0x338] sm:$0xff]
        %v446 = vld [vmem:[%s276 + $0x340] sm:$0xff]
        %v447 = vld [vmem:[%s276 + $0x348] sm:$0xff]
        %v448 = vld [vmem:[%s276 + $0x350] sm:$0xff]
        %v449 = vld [vmem:[%s276 + $0x358] sm:$0xff]
        %v450 = vld [vmem:[%s276 + $0x360] sm:$0xff]
        %v451 = vld [vmem:[%s276 + $0x368] sm:$0xff]
        %v452 = vld [vmem:[%s276 + $0x370] sm:$0xff]
        %v453 = vld [vmem:[%s276 + $0x378] sm:$0xff]
        %v454 = vld [vmem:[%s276 + $0x380] sm:$0xff]
        %v455 = vld [vmem:[%s276 + $0x388] sm:$0xff]
        %v456 = vld [vmem:[%s276 + $0x390] sm:$0xff]
        %v457 = vld [vmem:[%s276 + $0x398] sm:$0xff]
        %v458 = vld [vmem:[%s276 + $0x3a0] sm:$0xff]
        %v459 = vld [vmem:[%s276 + $0x3a8] sm:$0xff]
        %v460 = vld [vmem:[%s276 + $0x3b0] sm:$0xff]
        %v461 = vld [vmem:[%s276 + $0x3b8] sm:$0xff]
        %v462 = vld [vmem:[%s276 + $0x3c0] sm:$0xff]
        %v463 = vld [vmem:[%s276 + $0x3c8] sm:$0xff]
        %v464 = vld [vmem:[%s276 + $0x3d0] sm:$0xff]
        %v465 = vld [vmem:[%s276 + $0x3d8] sm:$0xff]
        %v466 = vld [vmem:[%s276 + $0x3e0] sm:$0xff]
        %v467 = vld [vmem:[%s276 + $0x3e8] sm:$0xff]
        %v468 = vld [vmem:[%s276 + $0x3f0] sm:$0xff]
        %v469 = vld [vmem:[%s276 + $0x3f8] sm:$0xff]
        %v598 = vunpack.c.l.b16 %v342
        %v599 = vunpack.c.h.b16 %v342
        %v600 = vunpack.c.l.b16 %v343
        %v601 = vunpack.c.h.b16 %v343
        %v602 = vunpack.c.l.b16 %v344
        %v603 = vunpack.c.h.b16 %v344
        %v604 = vunpack.c.l.b16 %v345
        %v605 = vunpack.c.h.b16 %v345
        %v606 = vunpack.c.l.b16 %v346
        %v607 = vunpack.c.h.b16 %v346
        %v608 = vunpack.c.l.b16 %v347
        %v609 = vunpack.c.h.b16 %v347
        %v610 = vunpack.c.l.b16 %v348
        %v611 = vunpack.c.h.b16 %v348
        %v612 = vunpack.c.l.b16 %v349
        %v613 = vunpack.c.h.b16 %v349
        %v614 = vunpack.c.l.b16 %v350
        %v615 = vunpack.c.h.b16 %v350
        %v616 = vunpack.c.l.b16 %v351
        %v617 = vunpack.c.h.b16 %v351
        %v618 = vunpack.c.l.b16 %v352
        %v619 = vunpack.c.h.b16 %v352
        %v620 = vunpack.c.l.b16 %v353
        %v621 = vunpack.c.h.b16 %v353
        %v622 = vunpack.c.l.b16 %v354
        %v623 = vunpack.c.h.b16 %v354
        %v624 = vunpack.c.l.b16 %v355
        %v625 = vunpack.c.h.b16 %v355
        %v626 = vunpack.c.l.b16 %v356
        %v627 = vunpack.c.h.b16 %v356
        %v628 = vunpack.c.l.b16 %v357
        %v629 = vunpack.c.h.b16 %v357
        %v630 = vunpack.c.l.b16 %v358
        %v631 = vunpack.c.h.b16 %v358
        %v632 = vunpack.c.l.b16 %v359
        %v633 = vunpack.c.h.b16 %v359
        %v634 = vunpack.c.l.b16 %v360
        %v635 = vunpack.c.h.b16 %v360
        %v636 = vunpack.c.l.b16 %v361
        %v637 = vunpack.c.h.b16 %v361
        %v638 = vunpack.c.l.b16 %v362
        %v639 = vunpack.c.h.b16 %v362
        %v640 = vunpack.c.l.b16 %v363
        %v641 = vunpack.c.h.b16 %v363
        %v642 = vunpack.c.l.b16 %v364
        %v643 = vunpack.c.h.b16 %v364
        %v644 = vunpack.c.l.b16 %v365
        %v645 = vunpack.c.h.b16 %v365
        %v646 = vunpack.c.l.b16 %v366
        %v647 = vunpack.c.h.b16 %v366
        %v648 = vunpack.c.l.b16 %v367
        %v649 = vunpack.c.h.b16 %v367
        %v650 = vunpack.c.l.b16 %v368
        %v651 = vunpack.c.h.b16 %v368
        %v652 = vunpack.c.l.b16 %v369
        %v653 = vunpack.c.h.b16 %v369
        %v654 = vunpack.c.l.b16 %v370
        %v655 = vunpack.c.h.b16 %v370
        %v656 = vunpack.c.l.b16 %v371
        %v657 = vunpack.c.h.b16 %v371
        %v658 = vunpack.c.l.b16 %v372
        %v659 = vunpack.c.h.b16 %v372
        %v660 = vunpack.c.l.b16 %v373
        %v661 = vunpack.c.h.b16 %v373
        %v662 = vunpack.c.l.b16 %v374
        %v663 = vunpack.c.h.b16 %v374
        %v664 = vunpack.c.l.b16 %v375
        %v665 = vunpack.c.h.b16 %v375
        %v666 = vunpack.c.l.b16 %v376
        %v667 = vunpack.c.h.b16 %v376
        %v668 = vunpack.c.l.b16 %v377
        %v669 = vunpack.c.h.b16 %v377
        %v670 = vunpack.c.l.b16 %v378
        %v671 = vunpack.c.h.b16 %v378
        %v672 = vunpack.c.l.b16 %v379
        %v673 = vunpack.c.h.b16 %v379
        %v674 = vunpack.c.l.b16 %v380
        %v675 = vunpack.c.h.b16 %v380
        %v676 = vunpack.c.l.b16 %v381
        %v677 = vunpack.c.h.b16 %v381
        %v678 = vunpack.c.l.b16 %v382
        %v679 = vunpack.c.h.b16 %v382
        %v680 = vunpack.c.l.b16 %v383
        %v681 = vunpack.c.h.b16 %v383
        %v682 = vunpack.c.l.b16 %v384
        %v683 = vunpack.c.h.b16 %v384
        %v684 = vunpack.c.l.b16 %v385
        %v685 = vunpack.c.h.b16 %v385
        %v686 = vunpack.c.l.b16 %v386
        %v687 = vunpack.c.h.b16 %v386
        %v688 = vunpack.c.l.b16 %v387
        %v689 = vunpack.c.h.b16 %v387
        %v690 = vunpack.c.l.b16 %v388
        %v691 = vunpack.c.h.b16 %v388
        %v692 = vunpack.c.l.b16 %v389
        %v693 = vunpack.c.h.b16 %v389
        %v694 = vunpack.c.l.b16 %v390
        %v695 = vunpack.c.h.b16 %v390
        %v696 = vunpack.c.l.b16 %v391
        %v697 = vunpack.c.h.b16 %v391
        %v698 = vunpack.c.l.b16 %v392
        %v699 = vunpack.c.h.b16 %v392
        %v700 = vunpack.c.l.b16 %v393
        %v701 = vunpack.c.h.b16 %v393
        %v702 = vunpack.c.l.b16 %v394
        %v703 = vunpack.c.h.b16 %v394
        %v704 = vunpack.c.l.b16 %v395
        %v705 = vunpack.c.h.b16 %v395
        %v706 = vunpack.c.l.b16 %v396
        %v707 = vunpack.c.h.b16 %v396
        %v708 = vunpack.c.l.b16 %v397
        %v709 = vunpack.c.h.b16 %v397
        %v710 = vunpack.c.l.b16 %v398
        %v711 = vunpack.c.h.b16 %v398
        %v712 = vunpack.c.l.b16 %v399
        %v713 = vunpack.c.h.b16 %v399
        %v714 = vunpack.c.l.b16 %v400
        %v715 = vunpack.c.h.b16 %v400
        %v716 = vunpack.c.l.b16 %v401
        %v717 = vunpack.c.h.b16 %v401
        %v718 = vunpack.c.l.b16 %v402
        %v719 = vunpack.c.h.b16 %v402
        %v720 = vunpack.c.l.b16 %v403
        %v721 = vunpack.c.h.b16 %v403
        %v722 = vunpack.c.l.b16 %v404
        %v723 = vunpack.c.h.b16 %v404
        %v724 = vunpack.c.l.b16 %v405
        %v725 = vunpack.c.h.b16 %v405
        %v726 = vunpack.c.l.b16 %v406
        %v727 = vunpack.c.h.b16 %v406
        %v728 = vunpack.c.l.b16 %v407
        %v729 = vunpack.c.h.b16 %v407
        %v730 = vunpack.c.l.b16 %v408
        %v731 = vunpack.c.h.b16 %v408
        %v732 = vunpack.c.l.b16 %v409
        %v733 = vunpack.c.h.b16 %v409
        %v734 = vunpack.c.l.b16 %v410
        %v735 = vunpack.c.h.b16 %v410
        %v736 = vunpack.c.l.b16 %v411
        %v737 = vunpack.c.h.b16 %v411
        %v738 = vunpack.c.l.b16 %v412
        %v739 = vunpack.c.h.b16 %v412
        %v740 = vunpack.c.l.b16 %v413
        %v741 = vunpack.c.h.b16 %v413
        %v742 = vunpack.c.l.b16 %v414
        %v743 = vunpack.c.h.b16 %v414
        %v744 = vunpack.c.l.b16 %v415
        %v745 = vunpack.c.h.b16 %v415
        %v746 = vunpack.c.l.b16 %v416
        %v747 = vunpack.c.h.b16 %v416
        %v748 = vunpack.c.l.b16 %v417
        %v749 = vunpack.c.h.b16 %v417
        %v750 = vunpack.c.l.b16 %v418
        %v751 = vunpack.c.h.b16 %v418
        %v752 = vunpack.c.l.b16 %v419
        %v753 = vunpack.c.h.b16 %v419
        %v754 = vunpack.c.l.b16 %v420
        %v755 = vunpack.c.h.b16 %v420
        %v756 = vunpack.c.l.b16 %v421
        %v757 = vunpack.c.h.b16 %v421
        %v758 = vunpack.c.l.b16 %v422
        %v759 = vunpack.c.h.b16 %v422
        %v760 = vunpack.c.l.b16 %v423
        %v761 = vunpack.c.h.b16 %v423
        %v762 = vunpack.c.l.b16 %v424
        %v763 = vunpack.c.h.b16 %v424
        %v764 = vunpack.c.l.b16 %v425
        %v765 = vunpack.c.h.b16 %v425
        %v766 = vunpack.c.l.b16 %v426
        %v767 = vunpack.c.h.b16 %v426
        %v768 = vunpack.c.l.b16 %v427
        %v769 = vunpack.c.h.b16 %v427
        %v770 = vunpack.c.l.b16 %v428
        %v771 = vunpack.c.h.b16 %v428
        %v772 = vunpack.c.l.b16 %v429
        %v773 = vunpack.c.h.b16 %v429
        %v774 = vunpack.c.l.b16 %v430
        %v775 = vunpack.c.h.b16 %v430
        %v776 = vunpack.c.l.b16 %v431
        %v777 = vunpack.c.h.b16 %v431
        %v778 = vunpack.c.l.b16 %v432
        %v779 = vunpack.c.h.b16 %v432
        %v780 = vunpack.c.l.b16 %v433
        %v781 = vunpack.c.h.b16 %v433
        %v782 = vunpack.c.l.b16 %v434
        %v783 = vunpack.c.h.b16 %v434
        %v784 = vunpack.c.l.b16 %v435
        %v785 = vunpack.c.h.b16 %v435
        %v786 = vunpack.c.l.b16 %v436
        %v787 = vunpack.c.h.b16 %v436
        %v788 = vunpack.c.l.b16 %v437
        %v789 = vunpack.c.h.b16 %v437
        %v790 = vunpack.c.l.b16 %v438
        %v791 = vunpack.c.h.b16 %v438
        %v792 = vunpack.c.l.b16 %v439
        %v793 = vunpack.c.h.b16 %v439
        %v794 = vunpack.c.l.b16 %v440
        %v795 = vunpack.c.h.b16 %v440
        %v796 = vunpack.c.l.b16 %v441
        %v797 = vunpack.c.h.b16 %v441
        %v798 = vunpack.c.l.b16 %v442
        %v799 = vunpack.c.h.b16 %v442
        %v800 = vunpack.c.l.b16 %v443
        %v801 = vunpack.c.h.b16 %v443
        %v802 = vunpack.c.l.b16 %v444
        %v803 = vunpack.c.h.b16 %v444
        %v804 = vunpack.c.l.b16 %v445
        %v805 = vunpack.c.h.b16 %v445
        %v806 = vunpack.c.l.b16 %v446
        %v807 = vunpack.c.h.b16 %v446
        %v808 = vunpack.c.l.b16 %v447
        %v809 = vunpack.c.h.b16 %v447
        %v810 = vunpack.c.l.b16 %v448
        %v811 = vunpack.c.h.b16 %v448
        %v812 = vunpack.c.l.b16 %v449
        %v813 = vunpack.c.h.b16 %v449
        %v814 = vunpack.c.l.b16 %v450
        %v815 = vunpack.c.h.b16 %v450
        %v816 = vunpack.c.l.b16 %v451
        %v817 = vunpack.c.h.b16 %v451
        %v818 = vunpack.c.l.b16 %v452
        %v819 = vunpack.c.h.b16 %v452
        %v820 = vunpack.c.l.b16 %v453
        %v821 = vunpack.c.h.b16 %v453
        %v822 = vunpack.c.l.b16 %v454
        %v823 = vunpack.c.h.b16 %v454
        %v824 = vunpack.c.l.b16 %v455
        %v825 = vunpack.c.h.b16 %v455
        %v826 = vunpack.c.l.b16 %v456
        %v827 = vunpack.c.h.b16 %v456
        %v828 = vunpack.c.l.b16 %v457
        %v829 = vunpack.c.h.b16 %v457
        %v830 = vunpack.c.l.b16 %v458
        %v831 = vunpack.c.h.b16 %v458
        %v832 = vunpack.c.l.b16 %v459
        %v833 = vunpack.c.h.b16 %v459
        %v834 = vunpack.c.l.b16 %v460
        %v835 = vunpack.c.h.b16 %v460
        %v836 = vunpack.c.l.b16 %v461
        %v837 = vunpack.c.h.b16 %v461
        %v838 = vunpack.c.l.b16 %v462
        %v839 = vunpack.c.h.b16 %v462
        %v840 = vunpack.c.l.b16 %v463
        %v841 = vunpack.c.h.b16 %v463
        %v842 = vunpack.c.l.b16 %v464
        %v843 = vunpack.c.h.b16 %v464
        %v844 = vunpack.c.l.b16 %v465
        %v845 = vunpack.c.h.b16 %v465
        %v846 = vunpack.c.l.b16 %v466
        %v847 = vunpack.c.h.b16 %v466
        %v848 = vunpack.c.l.b16 %v467
        %v849 = vunpack.c.h.b16 %v467
        %v850 = vunpack.c.l.b16 %v468
        %v851 = vunpack.c.h.b16 %v468
        %v852 = vunpack.c.l.b16 %v469
        %v853 = vunpack.c.h.b16 %v469
        %v854 = vpack.c.b16 %v606, %v598
        %v855 = vpack.c.b16 %v607, %v599
        %v856 = vpack.c.b16 %v608, %v600
        %v857 = vpack.c.b16 %v609, %v601
        %v858 = vpack.c.b16 %v610, %v602
        %v859 = vpack.c.b16 %v611, %v603
        %v860 = vpack.c.b16 %v612, %v604
        %v861 = vpack.c.b16 %v613, %v605
        %v862 = vpack.c.b16 %v622, %v614
        %v863 = vpack.c.b16 %v623, %v615
        %v864 = vpack.c.b16 %v624, %v616
        %v865 = vpack.c.b16 %v625, %v617
        %v866 = vpack.c.b16 %v626, %v618
        %v867 = vpack.c.b16 %v627, %v619
        %v868 = vpack.c.b16 %v628, %v620
        %v869 = vpack.c.b16 %v629, %v621
        %v870 = vpack.c.b16 %v638, %v630
        %v871 = vpack.c.b16 %v639, %v631
        %v872 = vpack.c.b16 %v640, %v632
        %v873 = vpack.c.b16 %v641, %v633
        %v874 = vpack.c.b16 %v642, %v634
        %v875 = vpack.c.b16 %v643, %v635
        %v876 = vpack.c.b16 %v644, %v636
        %v877 = vpack.c.b16 %v645, %v637
        %v878 = vpack.c.b16 %v654, %v646
        %v879 = vpack.c.b16 %v655, %v647
        %v880 = vpack.c.b16 %v656, %v648
        %v881 = vpack.c.b16 %v657, %v649
        %v882 = vpack.c.b16 %v658, %v650
        %v883 = vpack.c.b16 %v659, %v651
        %v884 = vpack.c.b16 %v660, %v652
        %v885 = vpack.c.b16 %v661, %v653
        %v886 = vpack.c.b16 %v670, %v662
        %v887 = vpack.c.b16 %v671, %v663
        %v888 = vpack.c.b16 %v672, %v664
        %v889 = vpack.c.b16 %v673, %v665
        %v890 = vpack.c.b16 %v674, %v666
        %v891 = vpack.c.b16 %v675, %v667
        %v892 = vpack.c.b16 %v676, %v668
        %v893 = vpack.c.b16 %v677, %v669
        %v894 = vpack.c.b16 %v686, %v678
        %v895 = vpack.c.b16 %v687, %v679
        %v896 = vpack.c.b16 %v688, %v680
        %v897 = vpack.c.b16 %v689, %v681
        %v898 = vpack.c.b16 %v690, %v682
        %v899 = vpack.c.b16 %v691, %v683
        %v900 = vpack.c.b16 %v692, %v684
        %v901 = vpack.c.b16 %v693, %v685
        %v902 = vpack.c.b16 %v702, %v694
        %v903 = vpack.c.b16 %v703, %v695
        %v904 = vpack.c.b16 %v704, %v696
        %v905 = vpack.c.b16 %v705, %v697
        %v906 = vpack.c.b16 %v706, %v698
        %v907 = vpack.c.b16 %v707, %v699
        %v908 = vpack.c.b16 %v708, %v700
        %v909 = vpack.c.b16 %v709, %v701
        %v910 = vpack.c.b16 %v718, %v710
        %v911 = vpack.c.b16 %v719, %v711
        %v912 = vpack.c.b16 %v720, %v712
        %v913 = vpack.c.b16 %v721, %v713
        %v914 = vpack.c.b16 %v722, %v714
        %v915 = vpack.c.b16 %v723, %v715
        %v916 = vpack.c.b16 %v724, %v716
        %v917 = vpack.c.b16 %v725, %v717
        %v918 = vpack.c.b16 %v734, %v726
        %v919 = vpack.c.b16 %v735, %v727
        %v920 = vpack.c.b16 %v736, %v728
        %v921 = vpack.c.b16 %v737, %v729
        %v922 = vpack.c.b16 %v738, %v730
        %v923 = vpack.c.b16 %v739, %v731
        %v924 = vpack.c.b16 %v740, %v732
        %v925 = vpack.c.b16 %v741, %v733
        %v926 = vpack.c.b16 %v750, %v742
        %v927 = vpack.c.b16 %v751, %v743
        %v928 = vpack.c.b16 %v752, %v744
        %v929 = vpack.c.b16 %v753, %v745
        %v930 = vpack.c.b16 %v754, %v746
        %v931 = vpack.c.b16 %v755, %v747
        %v932 = vpack.c.b16 %v756, %v748
        %v933 = vpack.c.b16 %v757, %v749
        %v934 = vpack.c.b16 %v766, %v758
        %v935 = vpack.c.b16 %v767, %v759
        %v936 = vpack.c.b16 %v768, %v760
        %v937 = vpack.c.b16 %v769, %v761
        %v938 = vpack.c.b16 %v770, %v762
        %v939 = vpack.c.b16 %v771, %v763
        %v940 = vpack.c.b16 %v772, %v764
        %v941 = vpack.c.b16 %v773, %v765
        %v942 = vpack.c.b16 %v782, %v774
        %v943 = vpack.c.b16 %v783, %v775
        %v944 = vpack.c.b16 %v784, %v776
        %v945 = vpack.c.b16 %v785, %v777
        %v946 = vpack.c.b16 %v786, %v778
        %v947 = vpack.c.b16 %v787, %v779
        %v948 = vpack.c.b16 %v788, %v780
        %v949 = vpack.c.b16 %v789, %v781
        %v950 = vpack.c.b16 %v798, %v790
        %v951 = vpack.c.b16 %v799, %v791
        %v952 = vpack.c.b16 %v800, %v792
        %v953 = vpack.c.b16 %v801, %v793
        %v954 = vpack.c.b16 %v802, %v794
        %v955 = vpack.c.b16 %v803, %v795
        %v956 = vpack.c.b16 %v804, %v796
        %v957 = vpack.c.b16 %v805, %v797
        %v958 = vpack.c.b16 %v814, %v806
        %v959 = vpack.c.b16 %v815, %v807
        %v960 = vpack.c.b16 %v816, %v808
        %v961 = vpack.c.b16 %v817, %v809
        %v962 = vpack.c.b16 %v818, %v810
        %v963 = vpack.c.b16 %v819, %v811
        %v964 = vpack.c.b16 %v820, %v812
        %v965 = vpack.c.b16 %v821, %v813
        %v966 = vpack.c.b16 %v830, %v822
        %v967 = vpack.c.b16 %v831, %v823
        %v968 = vpack.c.b16 %v832, %v824
        %v969 = vpack.c.b16 %v833, %v825
        %v970 = vpack.c.b16 %v834, %v826
        %v971 = vpack.c.b16 %v835, %v827
        %v972 = vpack.c.b16 %v836, %v828
        %v973 = vpack.c.b16 %v837, %v829
        %v974 = vpack.c.b16 %v846, %v838
        %v975 = vpack.c.b16 %v847, %v839
        %v976 = vpack.c.b16 %v848, %v840
        %v977 = vpack.c.b16 %v849, %v841
        %v978 = vpack.c.b16 %v850, %v842
        %v979 = vpack.c.b16 %v851, %v843
        %v980 = vpack.c.b16 %v852, %v844
        %v981 = vpack.c.b16 %v853, %v845
        %1110 = vmatpush.bf16.msra.mxu0 %v910
        %1111 = vmatpush.bf16.msra.mxu0 %v902
        %1112 = vmatpush.bf16.msra.mxu0 %v894
        %1113 = vmatpush.bf16.msra.mxu0 %v886
        %1114 = vmatpush.bf16.msra.mxu0 %v878
        %1115 = vmatpush.bf16.msra.mxu0 %v870
        %1116 = vmatpush.bf16.msra.mxu0 %v862
        %1117 = vmatpush.bf16.msra.mxu0 %v854
        %1118 = vmatmul.bf16.gmra.mxu0 %v340
        %v1119 = vpop.f32.mrf.mxu0
        %v1120 = vadd.f32 0.0, %v1119
        %v1121 = vpop.f32.mrf.mxu0
        %1122 = vdwg.mxu0
        %1123 = vmatpush.bf16.msra.mxu0 %v974
        %1124 = vmatpush.bf16.msra.mxu0 %v966
        %1125 = vmatpush.bf16.msra.mxu0 %v958
        %1126 = vmatpush.bf16.msra.mxu0 %v950
        %1127 = vmatpush.bf16.msra.mxu0 %v942
        %1128 = vmatpush.bf16.msra.mxu0 %v934
        %1129 = vmatpush.bf16.msra.mxu0 %v926
        %1130 = vmatpush.bf16.msra.mxu0 %v918
        %1131 = vmatmul.bf16.gmra.mxu0 %v341
        %v1132 = vpop.f32.mrf.mxu0
        %v1133 = vadd.f32 %v1120, %v1132
        %v1134 = vpop.f32.mrf.mxu0
        %1135 = vdwg.mxu0
        %1136 = vmatpush.bf16.msra.mxu0 %v911
        %1137 = vmatpush.bf16.msra.mxu0 %v903
        %1138 = vmatpush.bf16.msra.mxu0 %v895
        %1139 = vmatpush.bf16.msra.mxu0 %v887
        %1140 = vmatpush.bf16.msra.mxu0 %v879
        %1141 = vmatpush.bf16.msra.mxu0 %v871
        %1142 = vmatpush.bf16.msra.mxu0 %v863
        %1143 = vmatpush.bf16.msra.mxu0 %v855
        %1144 = vmatmul.bf16.gmra.mxu0 %v340
        %v1145 = vpop.f32.mrf.mxu0
        %v1146 = vadd.f32 0.0, %v1145
        %v1147 = vpop.f32.mrf.mxu0
        %1148 = vdwg.mxu0
        %1149 = vmatpush.bf16.msra.mxu0 %v975
        %1150 = vmatpush.bf16.msra.mxu0 %v967
        %1151 = vmatpush.bf16.msra.mxu0 %v959
        %1152 = vmatpush.bf16.msra.mxu0 %v951
        %1153 = vmatpush.bf16.msra.mxu0 %v943
        %1154 = vmatpush.bf16.msra.mxu0 %v935
        %1155 = vmatpush.bf16.msra.mxu0 %v927
        %1156 = vmatpush.bf16.msra.mxu0 %v919
        %1157 = vmatmul.bf16.gmra.mxu0 %v341
        %v1158 = vpop.f32.mrf.mxu0
        %v1159 = vadd.f32 %v1146, %v1158
        %v1160 = vpop.f32.mrf.mxu0
        %1161 = vdwg.mxu0
        %1162 = vmatpush.bf16.msra.mxu0 %v912
        %1163 = vmatpush.bf16.msra.mxu0 %v904
        %1164 = vmatpush.bf16.msra.mxu0 %v896
        %1165 = vmatpush.bf16.msra.mxu0 %v888
        %1166 = vmatpush.bf16.msra.mxu0 %v880
        %1167 = vmatpush.bf16.msra.mxu0 %v872
        %1168 = vmatpush.bf16.msra.mxu0 %v864
        %1169 = vmatpush.bf16.msra.mxu0 %v856
        %1170 = vmatmul.bf16.gmra.mxu0 %v340
        %v1171 = vpop.f32.mrf.mxu0
        %v1172 = vadd.f32 0.0, %v1171
        %v1173 = vpop.f32.mrf.mxu0
        %1174 = vdwg.mxu0
        %1175 = vmatpush.bf16.msra.mxu0 %v976
        %1176 = vmatpush.bf16.msra.mxu0 %v968
        %1177 = vmatpush.bf16.msra.mxu0 %v960
        %1178 = vmatpush.bf16.msra.mxu0 %v952
        %1179 = vmatpush.bf16.msra.mxu0 %v944
        %1180 = vmatpush.bf16.msra.mxu0 %v936
        %1181 = vmatpush.bf16.msra.mxu0 %v928
        %1182 = vmatpush.bf16.msra.mxu0 %v920
        %1183 = vmatmul.bf16.gmra.mxu0 %v341
        %v1184 = vpop.f32.mrf.mxu0
        %v1185 = vadd.f32 %v1172, %v1184
        %v1186 = vpop.f32.mrf.mxu0
        %1187 = vdwg.mxu0
        %1188 = vmatpush.bf16.msra.mxu0 %v913
        %1189 = vmatpush.bf16.msra.mxu0 %v905
        %1190 = vmatpush.bf16.msra.mxu0 %v897
        %1191 = vmatpush.bf16.msra.mxu0 %v889
        %1192 = vmatpush.bf16.msra.mxu0 %v881
        %1193 = vmatpush.bf16.msra.mxu0 %v873
        %1194 = vmatpush.bf16.msra.mxu0 %v865
        %1195 = vmatpush.bf16.msra.mxu0 %v857
        %1196 = vmatmul.bf16.gmra.mxu0 %v340
        %v1197 = vpop.f32.mrf.mxu0
        %v1198 = vadd.f32 0.0, %v1197
        %v1199 = vpop.f32.mrf.mxu0
        %1200 = vdwg.mxu0
        %1201 = vmatpush.bf16.msra.mxu0 %v977
        %1202 = vmatpush.bf16.msra.mxu0 %v969
        %1203 = vmatpush.bf16.msra.mxu0 %v961
        %1204 = vmatpush.bf16.msra.mxu0 %v953
        %1205 = vmatpush.bf16.msra.mxu0 %v945
        %1206 = vmatpush.bf16.msra.mxu0 %v937
        %1207 = vmatpush.bf16.msra.mxu0 %v929
        %1208 = vmatpush.bf16.msra.mxu0 %v921
        %1209 = vmatmul.bf16.gmra.mxu0 %v341
        %v1210 = vpop.f32.mrf.mxu0
        %v1211 = vadd.f32 %v1198, %v1210
        %v1212 = vpop.f32.mrf.mxu0
        %1213 = vdwg.mxu0
        %1214 = vmatpush.bf16.msra.mxu0 %v914
        %1215 = vmatpush.bf16.msra.mxu0 %v906
        %1216 = vmatpush.bf16.msra.mxu0 %v898
        %1217 = vmatpush.bf16.msra.mxu0 %v890
        %1218 = vmatpush.bf16.msra.mxu0 %v882
        %1219 = vmatpush.bf16.msra.mxu0 %v874
        %1220 = vmatpush.bf16.msra.mxu0 %v866
        %1221 = vmatpush.bf16.msra.mxu0 %v858
        %1222 = vmatmul.bf16.gmra.mxu0 %v340
        %v1223 = vpop.f32.mrf.mxu0
        %v1224 = vadd.f32 0.0, %v1223
        %v1225 = vpop.f32.mrf.mxu0
        %1226 = vdwg.mxu0
        %1227 = vmatpush.bf16.msra.mxu0 %v978
        %1228 = vmatpush.bf16.msra.mxu0 %v970
        %1229 = vmatpush.bf16.msra.mxu0 %v962
        %1230 = vmatpush.bf16.msra.mxu0 %v954
        %1231 = vmatpush.bf16.msra.mxu0 %v946
        %1232 = vmatpush.bf16.msra.mxu0 %v938
        %1233 = vmatpush.bf16.msra.mxu0 %v930
        %1234 = vmatpush.bf16.msra.mxu0 %v922
        %1235 = vmatmul.bf16.gmra.mxu0 %v341
        %v1236 = vpop.f32.mrf.mxu0
        %v1237 = vadd.f32 %v1224, %v1236
        %v1238 = vpop.f32.mrf.mxu0
        %1239 = vdwg.mxu0
        %1240 = vmatpush.bf16.msra.mxu0 %v915
        %1241 = vmatpush.bf16.msra.mxu0 %v907
        %1242 = vmatpush.bf16.msra.mxu0 %v899
        %1243 = vmatpush.bf16.msra.mxu0 %v891
        %1244 = vmatpush.bf16.msra.mxu0 %v883
        %1245 = vmatpush.bf16.msra.mxu0 %v875
        %1246 = vmatpush.bf16.msra.mxu0 %v867
        %1247 = vmatpush.bf16.msra.mxu0 %v859
        %1248 = vmatmul.bf16.gmra.mxu0 %v340
        %v1249 = vpop.f32.mrf.mxu0
        %v1250 = vadd.f32 0.0, %v1249
        %v1251 = vpop.f32.mrf.mxu0
        %1252 = vdwg.mxu0
        %1253 = vmatpush.bf16.msra.mxu0 %v979
        %1254 = vmatpush.bf16.msra.mxu0 %v971
        %1255 = vmatpush.bf16.msra.mxu0 %v963
        %1256 = vmatpush.bf16.msra.mxu0 %v955
        %1257 = vmatpush.bf16.msra.mxu0 %v947
        %1258 = vmatpush.bf16.msra.mxu0 %v939
        %1259 = vmatpush.bf16.msra.mxu0 %v931
        %1260 = vmatpush.bf16.msra.mxu0 %v923
        %1261 = vmatmul.bf16.gmra.mxu0 %v341
        %v1262 = vpop.f32.mrf.mxu0
        %v1263 = vadd.f32 %v1250, %v1262
        %v1264 = vpop.f32.mrf.mxu0
        %1265 = vdwg.mxu0
        %1266 = vmatpush.bf16.msra.mxu0 %v916
        %1267 = vmatpush.bf16.msra.mxu0 %v908
        %1268 = vmatpush.bf16.msra.mxu0 %v900
        %1269 = vmatpush.bf16.msra.mxu0 %v892
        %1270 = vmatpush.bf16.msra.mxu0 %v884
        %1271 = vmatpush.bf16.msra.mxu0 %v876
        %1272 = vmatpush.bf16.msra.mxu0 %v868
        %1273 = vmatpush.bf16.msra.mxu0 %v860
        %1274 = vmatmul.bf16.gmra.mxu0 %v340
        %v1275 = vpop.f32.mrf.mxu0
        %v1276 = vadd.f32 0.0, %v1275
        %v1277 = vpop.f32.mrf.mxu0
        %1278 = vdwg.mxu0
        %1279 = vmatpush.bf16.msra.mxu0 %v980
        %1280 = vmatpush.bf16.msra.mxu0 %v972
        %1281 = vmatpush.bf16.msra.mxu0 %v964
        %1282 = vmatpush.bf16.msra.mxu0 %v956
        %1283 = vmatpush.bf16.msra.mxu0 %v948
        %1284 = vmatpush.bf16.msra.mxu0 %v940
        %1285 = vmatpush.bf16.msra.mxu0 %v932
        %1286 = vmatpush.bf16.msra.mxu0 %v924
        %1287 = vmatmul.bf16.gmra.mxu0 %v341
        %v1288 = vpop.f32.mrf.mxu0
        %v1289 = vadd.f32 %v1276, %v1288
        %v1290 = vpop.f32.mrf.mxu0
        %1291 = vdwg.mxu0
        %1292 = vmatpush.bf16.msra.mxu0 %v917
        %1293 = vmatpush.bf16.msra.mxu0 %v909
        %1294 = vmatpush.bf16.msra.mxu0 %v901
        %1295 = vmatpush.bf16.msra.mxu0 %v893
        %1296 = vmatpush.bf16.msra.mxu0 %v885
        %1297 = vmatpush.bf16.msra.mxu0 %v877
        %1298 = vmatpush.bf16.msra.mxu0 %v869
        %1299 = vmatpush.bf16.msra.mxu0 %v861
        %1300 = vmatmul.bf16.gmra.mxu0 %v340
        %v1301 = vpop.f32.mrf.mxu0
        %v1302 = vadd.f32 0.0, %v1301
        %v1303 = vpop.f32.mrf.mxu0
        %1304 = vdwg.mxu0
        %1305 = vmatpush.bf16.msra.mxu0 %v981
        %1306 = vmatpush.bf16.msra.mxu0 %v973
        %1307 = vmatpush.bf16.msra.mxu0 %v965
        %1308 = vmatpush.bf16.msra.mxu0 %v957
        %1309 = vmatpush.bf16.msra.mxu0 %v949
        %1310 = vmatpush.bf16.msra.mxu0 %v941
        %1311 = vmatpush.bf16.msra.mxu0 %v933
        %1312 = vmatpush.bf16.msra.mxu0 %v925
        %1313 = vmatmul.bf16.gmra.mxu0 %v341
        %v1314 = vpop.f32.mrf.mxu0
        %v1315 = vadd.f32 %v1302, %v1314
        %v1316 = vpop.f32.mrf.mxu0
        %1317 = vdwg.mxu0
        %v1326 = vrot.slane %v1159, 4
        %v1327 = vrot.slane %v1211, 4
        %v1328 = vrot.slane %v1263, 4
        %v1329 = vrot.slane %v1315, 4
        %vm1330 = vcmask 1043456
        %v1331 = vsel %vm1330, %v1133, %v1326
        %v1332 = vsel %vm1330, %v1185, %v1327
        %v1333 = vsel %vm1330, %v1237, %v1328
        %v1334 = vsel %vm1330, %v1289, %v1329
        %v1339 = vadd.f32 %v329, %v1331
        %v1340 = vadd.f32 %v330, %v1332
        %v1341 = vadd.f32 %v331, %v1333
        %v1342 = vadd.f32 %v332, %v1334
        %1343 = vst [vmem:[#allocation2] sm:$0xff] %v1339
        %1344 = vst [vmem:[#allocation2 + $0x8] sm:$0xff] %v1340
        %1345 = vst [vmem:[#allocation2 + $0x10] sm:$0xff] %v1341
        %1346 = vst [vmem:[#allocation2 + $0x18] sm:$0xff] %v1342
        %p1347 = scmp.eq.s32.totalorder %s24, 3
        // Predicated region
        $region65: #{tpu_custom_call.1} parent=39 // pred_check
          %p1348 = pneg %p1347
        $region66: #{tpu_custom_call.1} parent=39 // pred_check_branch
          %1350 = sbr.rel (%p1348) target = $region68
        $region67: #{tpu_custom_call.1} parent=39 // pred_region
          %v1351 = vld [vmem:[#allocation2] sm:$0xff]
          %v1352 = vld [vmem:[#allocation2 + $0x8] sm:$0xff]
          %v1353 = vld [vmem:[#allocation2 + $0x10] sm:$0xff]
          %v1354 = vld [vmem:[#allocation2 + $0x18] sm:$0xff]
          %v1355 = vld [vmem:[#allocation8] sm:$0xff]
          %v1357 = vperm.slane %v1355, 0
          %v1358 = vperm.slane %v1355, 1
          %v1359 = vperm.slane %v1355, 2
          %v1360 = vperm.slane %v1355, 3
          %v1361 = vperm.slane %v1355, 4
          %v1362 = vperm.slane %v1355, 5
          %v1363 = vperm.slane %v1355, 6
          %v1364 = vperm.slane %v1355, 7
          %v1365 = vrot.slane %v1358, 4
          %v1366 = vrot.slane %v1360, 4
          %v1367 = vrot.slane %v1362, 4
          %v1368 = vrot.slane %v1364, 4
          %v1369 = vsel %vm1330, %v1357, %v1365
          %v1370 = vsel %vm1330, %v1359, %v1366
          %v1371 = vsel %vm1330, %v1361, %v1367
          %v1372 = vsel %vm1330, %v1363, %v1368
          %v1377 = vadd.f32 %v1351, %v1369
          %v1378 = vadd.f32 %v1352, %v1370
          %v1379 = vadd.f32 %v1353, %v1371
          %v1380 = vadd.f32 %v1354, %v1372
          %v1381 = vmax.f32 %v1377, 0.0
          %v1382 = vmax.f32 %v1378, 0.0
          %v1383 = vmax.f32 %v1379, 0.0
          %v1384 = vmax.f32 %v1380, 0.0
          %1389 = vst [vmem:[#allocation1] ss:$2 sm:$0xff] %v1381
          %s1390 = scalar_lea.vmem [#allocation1], 16
          %1391 = vst [vmem:[%s1390] ss:$2 sm:$0xff] %v1382
          %s1392 = scalar_lea.vmem [#allocation1], 32
          %1393 = vst [vmem:[%s1392] ss:$2 sm:$0xff] %v1383
          %s1394 = scalar_lea.vmem [#allocation1], 48
          %1395 = vst [vmem:[%s1394] ss:$2 sm:$0xff] %v1384
          %v1396 = vld.sshfl [vmem:[#allocation1] sm:$0xff pattern:$0x75316420]
          %v1397 = vld.sshfl [vmem:[#allocation1 + $0x8] sm:$0xff pattern:$0x75316420]
          %v1398 = vld.sshfl [vmem:[#allocation1 + $0x10] sm:$0xff pattern:$0x75316420]
          %v1399 = vld.sshfl [vmem:[#allocation1 + $0x18] sm:$0xff pattern:$0x75316420]
          %v1400 = vld.sshfl [vmem:[#allocation1 + $0x20] sm:$0xff pattern:$0x75316420]
          %v1401 = vld.sshfl [vmem:[#allocation1 + $0x28] sm:$0xff pattern:$0x75316420]
          %v1402 = vld.sshfl [vmem:[#allocation1 + $0x30] sm:$0xff pattern:$0x75316420]
          %v1403 = vld.sshfl [vmem:[#allocation1 + $0x38] sm:$0xff pattern:$0x75316420]
          %v1412 = vpack.c.bf16 %v1396, %v1396
          %v1413 = vpack.c.bf16 %v1397, %v1397
          %v1414 = vpack.c.bf16 %v1398, %v1398
          %v1415 = vpack.c.bf16 %v1399, %v1399
          %v1416 = vpack.c.bf16 %v1400, %v1400
          %v1417 = vpack.c.bf16 %v1401, %v1401
          %v1418 = vpack.c.bf16 %v1402, %v1402
          %v1419 = vpack.c.bf16 %v1403, %v1403
          %v1420 = vld [vmem:[#allocation9] sm:$0xff]
          %v1421 = vld [vmem:[#allocation9 + $0x8] sm:$0xff]
          %v1422 = vld [vmem:[#allocation9 + $0x10] sm:$0xff]
          %v1423 = vld [vmem:[#allocation9 + $0x18] sm:$0xff]
          %v1424 = vld [vmem:[#allocation9 + $0x20] sm:$0xff]
          %v1425 = vld [vmem:[#allocation9 + $0x28] sm:$0xff]
          %v1426 = vld [vmem:[#allocation9 + $0x30] sm:$0xff]
          %v1427 = vld [vmem:[#allocation9 + $0x38] sm:$0xff]
          %v1428 = vld [vmem:[#allocation9 + $0x40] sm:$0xff]
          %v1429 = vld [vmem:[#allocation9 + $0x48] sm:$0xff]
          %v1430 = vld [vmem:[#allocation9 + $0x50] sm:$0xff]
          %v1431 = vld [vmem:[#allocation9 + $0x58] sm:$0xff]
          %v1432 = vld [vmem:[#allocation9 + $0x60] sm:$0xff]
          %v1433 = vld [vmem:[#allocation9 + $0x68] sm:$0xff]
          %v1434 = vld [vmem:[#allocation9 + $0x70] sm:$0xff]
          %v1435 = vld [vmem:[#allocation9 + $0x78] sm:$0xff]
          %v1436 = vld [vmem:[#allocation9 + $0x80] sm:$0xff]
          %v1437 = vld [vmem:[#allocation9 + $0x88] sm:$0xff]
          %v1438 = vld [vmem:[#allocation9 + $0x90] sm:$0xff]
          %v1439 = vld [vmem:[#allocation9 + $0x98] sm:$0xff]
          %v1440 = vld [vmem:[#allocation9 + $0xa0] sm:$0xff]
          %v1441 = vld [vmem:[#allocation9 + $0xa8] sm:$0xff]
          %v1442 = vld [vmem:[#allocation9 + $0xb0] sm:$0xff]
          %v1443 = vld [vmem:[#allocation9 + $0xb8] sm:$0xff]
          %v1444 = vld [vmem:[#allocation9 + $0xc0] sm:$0xff]
          %v1445 = vld [vmem:[#allocation9 + $0xc8] sm:$0xff]
          %v1446 = vld [vmem:[#allocation9 + $0xd0] sm:$0xff]
          %v1447 = vld [vmem:[#allocation9 + $0xd8] sm:$0xff]
          %v1448 = vld [vmem:[#allocation9 + $0xe0] sm:$0xff]
          %v1449 = vld [vmem:[#allocation9 + $0xe8] sm:$0xff]
          %v1450 = vld [vmem:[#allocation9 + $0xf0] sm:$0xff]
          %v1451 = vld [vmem:[#allocation9 + $0xf8] sm:$0xff]
          %v1452 = vld [vmem:[#allocation9 + $0x100] sm:$0xff]
          %v1453 = vld [vmem:[#allocation9 + $0x108] sm:$0xff]
          %v1454 = vld [vmem:[#allocation9 + $0x110] sm:$0xff]
          %v1455 = vld [vmem:[#allocation9 + $0x118] sm:$0xff]
          %v1456 = vld [vmem:[#allocation9 + $0x120] sm:$0xff]
          %v1457 = vld [vmem:[#allocation9 + $0x128] sm:$0xff]
          %v1458 = vld [vmem:[#allocation9 + $0x130] sm:$0xff]
          %v1459 = vld [vmem:[#allocation9 + $0x138] sm:$0xff]
          %v1460 = vld [vmem:[#allocation9 + $0x140] sm:$0xff]
          %v1461 = vld [vmem:[#allocation9 + $0x148] sm:$0xff]
          %v1462 = vld [vmem:[#allocation9 + $0x150] sm:$0xff]
          %v1463 = vld [vmem:[#allocation9 + $0x158] sm:$0xff]
          %v1464 = vld [vmem:[#allocation9 + $0x160] sm:$0xff]
          %v1465 = vld [vmem:[#allocation9 + $0x168] sm:$0xff]
          %v1466 = vld [vmem:[#allocation9 + $0x170] sm:$0xff]
          %v1467 = vld [vmem:[#allocation9 + $0x178] sm:$0xff]
          %v1468 = vld [vmem:[#allocation9 + $0x180] sm:$0xff]
          %v1469 = vld [vmem:[#allocation9 + $0x188] sm:$0xff]
          %v1470 = vld [vmem:[#allocation9 + $0x190] sm:$0xff]
          %v1471 = vld [vmem:[#allocation9 + $0x198] sm:$0xff]
          %v1472 = vld [vmem:[#allocation9 + $0x1a0] sm:$0xff]
          %v1473 = vld [vmem:[#allocation9 + $0x1a8] sm:$0xff]
          %v1474 = vld [vmem:[#allocation9 + $0x1b0] sm:$0xff]
          %v1475 = vld [vmem:[#allocation9 + $0x1b8] sm:$0xff]
          %v1476 = vld [vmem:[#allocation9 + $0x1c0] sm:$0xff]
          %v1477 = vld [vmem:[#allocation9 + $0x1c8] sm:$0xff]
          %v1478 = vld [vmem:[#allocation9 + $0x1d0] sm:$0xff]
          %v1479 = vld [vmem:[#allocation9 + $0x1d8] sm:$0xff]
          %v1480 = vld [vmem:[#allocation9 + $0x1e0] sm:$0xff]
          %v1481 = vld [vmem:[#allocation9 + $0x1e8] sm:$0xff]
          %v1482 = vld [vmem:[#allocation9 + $0x1f0] sm:$0xff]
          %v1483 = vld [vmem:[#allocation9 + $0x1f8] sm:$0xff]
          %v1484 = vld [vmem:[#allocation9 + $0x200] sm:$0xff]
          %v1485 = vld [vmem:[#allocation9 + $0x208] sm:$0xff]
          %v1486 = vld [vmem:[#allocation9 + $0x210] sm:$0xff]
          %v1487 = vld [vmem:[#allocation9 + $0x218] sm:$0xff]
          %v1488 = vld [vmem:[#allocation9 + $0x220] sm:$0xff]
          %v1489 = vld [vmem:[#allocation9 + $0x228] sm:$0xff]
          %v1490 = vld [vmem:[#allocation9 + $0x230] sm:$0xff]
          %v1491 = vld [vmem:[#allocation9 + $0x238] sm:$0xff]
          %v1492 = vld [vmem:[#allocation9 + $0x240] sm:$0xff]
          %v1493 = vld [vmem:[#allocation9 + $0x248] sm:$0xff]
          %v1494 = vld [vmem:[#allocation9 + $0x250] sm:$0xff]
          %v1495 = vld [vmem:[#allocation9 + $0x258] sm:$0xff]
          %v1496 = vld [vmem:[#allocation9 + $0x260] sm:$0xff]
          %v1497 = vld [vmem:[#allocation9 + $0x268] sm:$0xff]
          %v1498 = vld [vmem:[#allocation9 + $0x270] sm:$0xff]
          %v1499 = vld [vmem:[#allocation9 + $0x278] sm:$0xff]
          %v1500 = vld [vmem:[#allocation9 + $0x280] sm:$0xff]
          %v1501 = vld [vmem:[#allocation9 + $0x288] sm:$0xff]
          %v1502 = vld [vmem:[#allocation9 + $0x290] sm:$0xff]
          %v1503 = vld [vmem:[#allocation9 + $0x298] sm:$0xff]
          %v1504 = vld [vmem:[#allocation9 + $0x2a0] sm:$0xff]
          %v1505 = vld [vmem:[#allocation9 + $0x2a8] sm:$0xff]
          %v1506 = vld [vmem:[#allocation9 + $0x2b0] sm:$0xff]
          %v1507 = vld [vmem:[#allocation9 + $0x2b8] sm:$0xff]
          %v1508 = vld [vmem:[#allocation9 + $0x2c0] sm:$0xff]
          %v1509 = vld [vmem:[#allocation9 + $0x2c8] sm:$0xff]
          %v1510 = vld [vmem:[#allocation9 + $0x2d0] sm:$0xff]
          %v1511 = vld [vmem:[#allocation9 + $0x2d8] sm:$0xff]
          %v1512 = vld [vmem:[#allocation9 + $0x2e0] sm:$0xff]
          %v1513 = vld [vmem:[#allocation9 + $0x2e8] sm:$0xff]
          %v1514 = vld [vmem:[#allocation9 + $0x2f0] sm:$0xff]
          %v1515 = vld [vmem:[#allocation9 + $0x2f8] sm:$0xff]
          %v1516 = vld [vmem:[#allocation9 + $0x300] sm:$0xff]
          %v1517 = vld [vmem:[#allocation9 + $0x308] sm:$0xff]
          %v1518 = vld [vmem:[#allocation9 + $0x310] sm:$0xff]
          %v1519 = vld [vmem:[#allocation9 + $0x318] sm:$0xff]
          %v1520 = vld [vmem:[#allocation9 + $0x320] sm:$0xff]
          %v1521 = vld [vmem:[#allocation9 + $0x328] sm:$0xff]
          %v1522 = vld [vmem:[#allocation9 + $0x330] sm:$0xff]
          %v1523 = vld [vmem:[#allocation9 + $0x338] sm:$0xff]
          %v1524 = vld [vmem:[#allocation9 + $0x340] sm:$0xff]
          %v1525 = vld [vmem:[#allocation9 + $0x348] sm:$0xff]
          %v1526 = vld [vmem:[#allocation9 + $0x350] sm:$0xff]
          %v1527 = vld [vmem:[#allocation9 + $0x358] sm:$0xff]
          %v1528 = vld [vmem:[#allocation9 + $0x360] sm:$0xff]
          %v1529 = vld [vmem:[#allocation9 + $0x368] sm:$0xff]
          %v1530 = vld [vmem:[#allocation9 + $0x370] sm:$0xff]
          %v1531 = vld [vmem:[#allocation9 + $0x378] sm:$0xff]
          %v1532 = vld [vmem:[#allocation9 + $0x380] sm:$0xff]
          %v1533 = vld [vmem:[#allocation9 + $0x388] sm:$0xff]
          %v1534 = vld [vmem:[#allocation9 + $0x390] sm:$0xff]
          %v1535 = vld [vmem:[#allocation9 + $0x398] sm:$0xff]
          %v1536 = vld [vmem:[#allocation9 + $0x3a0] sm:$0xff]
          %v1537 = vld [vmem:[#allocation9 + $0x3a8] sm:$0xff]
          %v1538 = vld [vmem:[#allocation9 + $0x3b0] sm:$0xff]
          %v1539 = vld [vmem:[#allocation9 + $0x3b8] sm:$0xff]
          %v1540 = vld [vmem:[#allocation9 + $0x3c0] sm:$0xff]
          %v1541 = vld [vmem:[#allocation9 + $0x3c8] sm:$0xff]
          %v1542 = vld [vmem:[#allocation9 + $0x3d0] sm:$0xff]
          %v1543 = vld [vmem:[#allocation9 + $0x3d8] sm:$0xff]
          %v1544 = vld [vmem:[#allocation9 + $0x3e0] sm:$0xff]
          %v1545 = vld [vmem:[#allocation9 + $0x3e8] sm:$0xff]
          %v1546 = vld [vmem:[#allocation9 + $0x3f0] sm:$0xff]
          %v1547 = vld [vmem:[#allocation9 + $0x3f8] sm:$0xff]
          %v1548 = vld [vmem:[#allocation9 + $0x400] sm:$0xff]
          %v1549 = vld [vmem:[#allocation9 + $0x408] sm:$0xff]
          %v1550 = vld [vmem:[#allocation9 + $0x410] sm:$0xff]
          %v1551 = vld [vmem:[#allocation9 + $0x418] sm:$0xff]
          %v1552 = vld [vmem:[#allocation9 + $0x420] sm:$0xff]
          %v1553 = vld [vmem:[#allocation9 + $0x428] sm:$0xff]
          %v1554 = vld [vmem:[#allocation9 + $0x430] sm:$0xff]
          %v1555 = vld [vmem:[#allocation9 + $0x438] sm:$0xff]
          %v1556 = vld [vmem:[#allocation9 + $0x440] sm:$0xff]
          %v1557 = vld [vmem:[#allocation9 + $0x448] sm:$0xff]
          %v1558 = vld [vmem:[#allocation9 + $0x450] sm:$0xff]
          %v1559 = vld [vmem:[#allocation9 + $0x458] sm:$0xff]
          %v1560 = vld [vmem:[#allocation9 + $0x460] sm:$0xff]
          %v1561 = vld [vmem:[#allocation9 + $0x468] sm:$0xff]
          %v1562 = vld [vmem:[#allocation9 + $0x470] sm:$0xff]
          %v1563 = vld [vmem:[#allocation9 + $0x478] sm:$0xff]
          %v1564 = vld [vmem:[#allocation9 + $0x480] sm:$0xff]
          %v1565 = vld [vmem:[#allocation9 + $0x488] sm:$0xff]
          %v1566 = vld [vmem:[#allocation9 + $0x490] sm:$0xff]
          %v1567 = vld [vmem:[#allocation9 + $0x498] sm:$0xff]
          %v1568 = vld [vmem:[#allocation9 + $0x4a0] sm:$0xff]
          %v1569 = vld [vmem:[#allocation9 + $0x4a8] sm:$0xff]
          %v1570 = vld [vmem:[#allocation9 + $0x4b0] sm:$0xff]
          %v1571 = vld [vmem:[#allocation9 + $0x4b8] sm:$0xff]
          %v1572 = vld [vmem:[#allocation9 + $0x4c0] sm:$0xff]
          %v1573 = vld [vmem:[#allocation9 + $0x4c8] sm:$0xff]
          %v1574 = vld [vmem:[#allocation9 + $0x4d0] sm:$0xff]
          %v1575 = vld [vmem:[#allocation9 + $0x4d8] sm:$0xff]
          %v1576 = vld [vmem:[#allocation9 + $0x4e0] sm:$0xff]
          %v1577 = vld [vmem:[#allocation9 + $0x4e8] sm:$0xff]
          %v1578 = vld [vmem:[#allocation9 + $0x4f0] sm:$0xff]
          %v1579 = vld [vmem:[#allocation9 + $0x4f8] sm:$0xff]
          %v1580 = vld [vmem:[#allocation9 + $0x500] sm:$0xff]
          %v1581 = vld [vmem:[#allocation9 + $0x508] sm:$0xff]
          %v1582 = vld [vmem:[#allocation9 + $0x510] sm:$0xff]
          %v1583 = vld [vmem:[#allocation9 + $0x518] sm:$0xff]
          %v1584 = vld [vmem:[#allocation9 + $0x520] sm:$0xff]
          %v1585 = vld [vmem:[#allocation9 + $0x528] sm:$0xff]
          %v1586 = vld [vmem:[#allocation9 + $0x530] sm:$0xff]
          %v1587 = vld [vmem:[#allocation9 + $0x538] sm:$0xff]
          %v1588 = vld [vmem:[#allocation9 + $0x540] sm:$0xff]
          %v1589 = vld [vmem:[#allocation9 + $0x548] sm:$0xff]
          %v1590 = vld [vmem:[#allocation9 + $0x550] sm:$0xff]
          %v1591 = vld [vmem:[#allocation9 + $0x558] sm:$0xff]
          %v1592 = vld [vmem:[#allocation9 + $0x560] sm:$0xff]
          %v1593 = vld [vmem:[#allocation9 + $0x568] sm:$0xff]
          %v1594 = vld [vmem:[#allocation9 + $0x570] sm:$0xff]
          %v1595 = vld [vmem:[#allocation9 + $0x578] sm:$0xff]
          %v1596 = vld [vmem:[#allocation9 + $0x580] sm:$0xff]
          %v1597 = vld [vmem:[#allocation9 + $0x588] sm:$0xff]
          %v1598 = vld [vmem:[#allocation9 + $0x590] sm:$0xff]
          %v1599 = vld [vmem:[#allocation9 + $0x598] sm:$0xff]
          %v1600 = vld [vmem:[#allocation9 + $0x5a0] sm:$0xff]
          %v1601 = vld [vmem:[#allocation9 + $0x5a8] sm:$0xff]
          %v1602 = vld [vmem:[#allocation9 + $0x5b0] sm:$0xff]
          %v1603 = vld [vmem:[#allocation9 + $0x5b8] sm:$0xff]
          %v1604 = vld [vmem:[#allocation9 + $0x5c0] sm:$0xff]
          %v1605 = vld [vmem:[#allocation9 + $0x5c8] sm:$0xff]
          %v1606 = vld [vmem:[#allocation9 + $0x5d0] sm:$0xff]
          %v1607 = vld [vmem:[#allocation9 + $0x5d8] sm:$0xff]
          %v1608 = vld [vmem:[#allocation9 + $0x5e0] sm:$0xff]
          %v1609 = vld [vmem:[#allocation9 + $0x5e8] sm:$0xff]
          %v1610 = vld [vmem:[#allocation9 + $0x5f0] sm:$0xff]
          %v1611 = vld [vmem:[#allocation9 + $0x5f8] sm:$0xff]
          %v1612 = vld [vmem:[#allocation9 + $0x600] sm:$0xff]
          %v1613 = vld [vmem:[#allocation9 + $0x608] sm:$0xff]
          %v1614 = vld [vmem:[#allocation9 + $0x610] sm:$0xff]
          %v1615 = vld [vmem:[#allocation9 + $0x618] sm:$0xff]
          %v1616 = vld [vmem:[#allocation9 + $0x620] sm:$0xff]
          %v1617 = vld [vmem:[#allocation9 + $0x628] sm:$0xff]
          %v1618 = vld [vmem:[#allocation9 + $0x630] sm:$0xff]
          %v1619 = vld [vmem:[#allocation9 + $0x638] sm:$0xff]
          %v1620 = vld [vmem:[#allocation9 + $0x640] sm:$0xff]
          %v1621 = vld [vmem:[#allocation9 + $0x648] sm:$0xff]
          %v1622 = vld [vmem:[#allocation9 + $0x650] sm:$0xff]
          %v1623 = vld [vmem:[#allocation9 + $0x658] sm:$0xff]
          %v1624 = vld [vmem:[#allocation9 + $0x660] sm:$0xff]
          %v1625 = vld [vmem:[#allocation9 + $0x668] sm:$0xff]
          %v1626 = vld [vmem:[#allocation9 + $0x670] sm:$0xff]
          %v1627 = vld [vmem:[#allocation9 + $0x678] sm:$0xff]
          %v1628 = vld [vmem:[#allocation9 + $0x680] sm:$0xff]
          %v1629 = vld [vmem:[#allocation9 + $0x688] sm:$0xff]
          %v1630 = vld [vmem:[#allocation9 + $0x690] sm:$0xff]
          %v1631 = vld [vmem:[#allocation9 + $0x698] sm:$0xff]
          %v1632 = vld [vmem:[#allocation9 + $0x6a0] sm:$0xff]
          %v1633 = vld [vmem:[#allocation9 + $0x6a8] sm:$0xff]
          %v1634 = vld [vmem:[#allocation9 + $0x6b0] sm:$0xff]
          %v1635 = vld [vmem:[#allocation9 + $0x6b8] sm:$0xff]
          %v1636 = vld [vmem:[#allocation9 + $0x6c0] sm:$0xff]
          %v1637 = vld [vmem:[#allocation9 + $0x6c8] sm:$0xff]
          %v1638 = vld [vmem:[#allocation9 + $0x6d0] sm:$0xff]
          %v1639 = vld [vmem:[#allocation9 + $0x6d8] sm:$0xff]
          %v1640 = vld [vmem:[#allocation9 + $0x6e0] sm:$0xff]
          %v1641 = vld [vmem:[#allocation9 + $0x6e8] sm:$0xff]
          %v1642 = vld [vmem:[#allocation9 + $0x6f0] sm:$0xff]
          %v1643 = vld [vmem:[#allocation9 + $0x6f8] sm:$0xff]
          %v1644 = vld [vmem:[#allocation9 + $0x700] sm:$0xff]
          %v1645 = vld [vmem:[#allocation9 + $0x708] sm:$0xff]
          %v1646 = vld [vmem:[#allocation9 + $0x710] sm:$0xff]
          %v1647 = vld [vmem:[#allocation9 + $0x718] sm:$0xff]
          %v1648 = vld [vmem:[#allocation9 + $0x720] sm:$0xff]
          %v1649 = vld [vmem:[#allocation9 + $0x728] sm:$0xff]
          %v1650 = vld [vmem:[#allocation9 + $0x730] sm:$0xff]
          %v1651 = vld [vmem:[#allocation9 + $0x738] sm:$0xff]
          %v1652 = vld [vmem:[#allocation9 + $0x740] sm:$0xff]
          %v1653 = vld [vmem:[#allocation9 + $0x748] sm:$0xff]
          %v1654 = vld [vmem:[#allocation9 + $0x750] sm:$0xff]
          %v1655 = vld [vmem:[#allocation9 + $0x758] sm:$0xff]
          %v1656 = vld [vmem:[#allocation9 + $0x760] sm:$0xff]
          %v1657 = vld [vmem:[#allocation9 + $0x768] sm:$0xff]
          %v1658 = vld [vmem:[#allocation9 + $0x770] sm:$0xff]
          %v1659 = vld [vmem:[#allocation9 + $0x778] sm:$0xff]
          %v1660 = vld [vmem:[#allocation9 + $0x780] sm:$0xff]
          %v1661 = vld [vmem:[#allocation9 + $0x788] sm:$0xff]
          %v1662 = vld [vmem:[#allocation9 + $0x790] sm:$0xff]
          %v1663 = vld [vmem:[#allocation9 + $0x798] sm:$0xff]
          %v1664 = vld [vmem:[#allocation9 + $0x7a0] sm:$0xff]
          %v1665 = vld [vmem:[#allocation9 + $0x7a8] sm:$0xff]
          %v1666 = vld [vmem:[#allocation9 + $0x7b0] sm:$0xff]
          %v1667 = vld [vmem:[#allocation9 + $0x7b8] sm:$0xff]
          %v1668 = vld [vmem:[#allocation9 + $0x7c0] sm:$0xff]
          %v1669 = vld [vmem:[#allocation9 + $0x7c8] sm:$0xff]
          %v1670 = vld [vmem:[#allocation9 + $0x7d0] sm:$0xff]
          %v1671 = vld [vmem:[#allocation9 + $0x7d8] sm:$0xff]
          %v1672 = vld [vmem:[#allocation9 + $0x7e0] sm:$0xff]
          %v1673 = vld [vmem:[#allocation9 + $0x7e8] sm:$0xff]
          %v1674 = vld [vmem:[#allocation9 + $0x7f0] sm:$0xff]
          %v1675 = vld [vmem:[#allocation9 + $0x7f8] sm:$0xff]
          %v1676 = vld [vmem:[#allocation11] sm:$0xf]
          %v1678 = vperm.slane %v1676, 0
          %v1679 = vperm.slane %v1676, 1
          %v1680 = vperm.slane %v1676, 2
          %v1681 = vperm.slane %v1676, 3
          %v1942 = vunpack.c.l.b16 %v1420
          %v1943 = vunpack.c.h.b16 %v1420
          %v1944 = vunpack.c.l.b16 %v1421
          %v1945 = vunpack.c.h.b16 %v1421
          %v1946 = vunpack.c.l.b16 %v1422
          %v1947 = vunpack.c.h.b16 %v1422
          %v1948 = vunpack.c.l.b16 %v1423
          %v1949 = vunpack.c.h.b16 %v1423
          %v1950 = vunpack.c.l.b16 %v1424
          %v1951 = vunpack.c.h.b16 %v1424
          %v1952 = vunpack.c.l.b16 %v1425
          %v1953 = vunpack.c.h.b16 %v1425
          %v1954 = vunpack.c.l.b16 %v1426
          %v1955 = vunpack.c.h.b16 %v1426
          %v1956 = vunpack.c.l.b16 %v1427
          %v1957 = vunpack.c.h.b16 %v1427
          %v1958 = vunpack.c.l.b16 %v1428
          %v1959 = vunpack.c.h.b16 %v1428
          %v1960 = vunpack.c.l.b16 %v1429
          %v1961 = vunpack.c.h.b16 %v1429
          %v1962 = vunpack.c.l.b16 %v1430
          %v1963 = vunpack.c.h.b16 %v1430
          %v1964 = vunpack.c.l.b16 %v1431
          %v1965 = vunpack.c.h.b16 %v1431
          %v1966 = vunpack.c.l.b16 %v1432
          %v1967 = vunpack.c.h.b16 %v1432
          %v1968 = vunpack.c.l.b16 %v1433
          %v1969 = vunpack.c.h.b16 %v1433
          %v1970 = vunpack.c.l.b16 %v1434
          %v1971 = vunpack.c.h.b16 %v1434
          %v1972 = vunpack.c.l.b16 %v1435
          %v1973 = vunpack.c.h.b16 %v1435
          %v1974 = vunpack.c.l.b16 %v1436
          %v1975 = vunpack.c.h.b16 %v1436
          %v1976 = vunpack.c.l.b16 %v1437
          %v1977 = vunpack.c.h.b16 %v1437
          %v1978 = vunpack.c.l.b16 %v1438
          %v1979 = vunpack.c.h.b16 %v1438
          %v1980 = vunpack.c.l.b16 %v1439
          %v1981 = vunpack.c.h.b16 %v1439
          %v1982 = vunpack.c.l.b16 %v1440
          %v1983 = vunpack.c.h.b16 %v1440
          %v1984 = vunpack.c.l.b16 %v1441
          %v1985 = vunpack.c.h.b16 %v1441
          %v1986 = vunpack.c.l.b16 %v1442
          %v1987 = vunpack.c.h.b16 %v1442
          %v1988 = vunpack.c.l.b16 %v1443
          %v1989 = vunpack.c.h.b16 %v1443
          %v1990 = vunpack.c.l.b16 %v1444
          %v1991 = vunpack.c.h.b16 %v1444
          %v1992 = vunpack.c.l.b16 %v1445
          %v1993 = vunpack.c.h.b16 %v1445
          %v1994 = vunpack.c.l.b16 %v1446
          %v1995 = vunpack.c.h.b16 %v1446
          %v1996 = vunpack.c.l.b16 %v1447
          %v1997 = vunpack.c.h.b16 %v1447
          %v1998 = vunpack.c.l.b16 %v1448
          %v1999 = vunpack.c.h.b16 %v1448
          %v2000 = vunpack.c.l.b16 %v1449
          %v2001 = vunpack.c.h.b16 %v1449
          %v2002 = vunpack.c.l.b16 %v1450
          %v2003 = vunpack.c.h.b16 %v1450
          %v2004 = vunpack.c.l.b16 %v1451
          %v2005 = vunpack.c.h.b16 %v1451
          %v2006 = vunpack.c.l.b16 %v1452
          %v2007 = vunpack.c.h.b16 %v1452
          %v2008 = vunpack.c.l.b16 %v1453
          %v2009 = vunpack.c.h.b16 %v1453
          %v2010 = vunpack.c.l.b16 %v1454
          %v2011 = vunpack.c.h.b16 %v1454
          %v2012 = vunpack.c.l.b16 %v1455
          %v2013 = vunpack.c.h.b16 %v1455
          %v2014 = vunpack.c.l.b16 %v1456
          %v2015 = vunpack.c.h.b16 %v1456
          %v2016 = vunpack.c.l.b16 %v1457
          %v2017 = vunpack.c.h.b16 %v1457
          %v2018 = vunpack.c.l.b16 %v1458
          %v2019 = vunpack.c.h.b16 %v1458
          %v2020 = vunpack.c.l.b16 %v1459
          %v2021 = vunpack.c.h.b16 %v1459
          %v2022 = vunpack.c.l.b16 %v1460
          %v2023 = vunpack.c.h.b16 %v1460
          %v2024 = vunpack.c.l.b16 %v1461
          %v2025 = vunpack.c.h.b16 %v1461
          %v2026 = vunpack.c.l.b16 %v1462
          %v2027 = vunpack.c.h.b16 %v1462
          %v2028 = vunpack.c.l.b16 %v1463
          %v2029 = vunpack.c.h.b16 %v1463
          %v2030 = vunpack.c.l.b16 %v1464
          %v2031 = vunpack.c.h.b16 %v1464
          %v2032 = vunpack.c.l.b16 %v1465
          %v2033 = vunpack.c.h.b16 %v1465
          %v2034 = vunpack.c.l.b16 %v1466
          %v2035 = vunpack.c.h.b16 %v1466
          %v2036 = vunpack.c.l.b16 %v1467
          %v2037 = vunpack.c.h.b16 %v1467
          %v2038 = vunpack.c.l.b16 %v1468
          %v2039 = vunpack.c.h.b16 %v1468
          %v2040 = vunpack.c.l.b16 %v1469
          %v2041 = vunpack.c.h.b16 %v1469
          %v2042 = vunpack.c.l.b16 %v1470
          %v2043 = vunpack.c.h.b16 %v1470
          %v2044 = vunpack.c.l.b16 %v1471
          %v2045 = vunpack.c.h.b16 %v1471
          %v2046 = vunpack.c.l.b16 %v1472
          %v2047 = vunpack.c.h.b16 %v1472
          %v2048 = vunpack.c.l.b16 %v1473
          %v2049 = vunpack.c.h.b16 %v1473
          %v2050 = vunpack.c.l.b16 %v1474
          %v2051 = vunpack.c.h.b16 %v1474
          %v2052 = vunpack.c.l.b16 %v1475
          %v2053 = vunpack.c.h.b16 %v1475
          %v2054 = vunpack.c.l.b16 %v1476
          %v2055 = vunpack.c.h.b16 %v1476
          %v2056 = vunpack.c.l.b16 %v1477
          %v2057 = vunpack.c.h.b16 %v1477
          %v2058 = vunpack.c.l.b16 %v1478
          %v2059 = vunpack.c.h.b16 %v1478
          %v2060 = vunpack.c.l.b16 %v1479
          %v2061 = vunpack.c.h.b16 %v1479
          %v2062 = vunpack.c.l.b16 %v1480
          %v2063 = vunpack.c.h.b16 %v1480
          %v2064 = vunpack.c.l.b16 %v1481
          %v2065 = vunpack.c.h.b16 %v1481
          %v2066 = vunpack.c.l.b16 %v1482
          %v2067 = vunpack.c.h.b16 %v1482
          %v2068 = vunpack.c.l.b16 %v1483
          %v2069 = vunpack.c.h.b16 %v1483
          %v2070 = vunpack.c.l.b16 %v1484
          %v2071 = vunpack.c.h.b16 %v1484
          %v2072 = vunpack.c.l.b16 %v1485
          %v2073 = vunpack.c.h.b16 %v1485
          %v2074 = vunpack.c.l.b16 %v1486
          %v2075 = vunpack.c.h.b16 %v1486
          %v2076 = vunpack.c.l.b16 %v1487
          %v2077 = vunpack.c.h.b16 %v1487
          %v2078 = vunpack.c.l.b16 %v1488
          %v2079 = vunpack.c.h.b16 %v1488
          %v2080 = vunpack.c.l.b16 %v1489
          %v2081 = vunpack.c.h.b16 %v1489
          %v2082 = vunpack.c.l.b16 %v1490
          %v2083 = vunpack.c.h.b16 %v1490
          %v2084 = vunpack.c.l.b16 %v1491
          %v2085 = vunpack.c.h.b16 %v1491
          %v2086 = vunpack.c.l.b16 %v1492
          %v2087 = vunpack.c.h.b16 %v1492
          %v2088 = vunpack.c.l.b16 %v1493
          %v2089 = vunpack.c.h.b16 %v1493
          %v2090 = vunpack.c.l.b16 %v1494
          %v2091 = vunpack.c.h.b16 %v1494
          %v2092 = vunpack.c.l.b16 %v1495
          %v2093 = vunpack.c.h.b16 %v1495
          %v2094 = vunpack.c.l.b16 %v1496
          %v2095 = vunpack.c.h.b16 %v1496
          %v2096 = vunpack.c.l.b16 %v1497
          %v2097 = vunpack.c.h.b16 %v1497
          %v2098 = vunpack.c.l.b16 %v1498
          %v2099 = vunpack.c.h.b16 %v1498
          %v2100 = vunpack.c.l.b16 %v1499
          %v2101 = vunpack.c.h.b16 %v1499
          %v2102 = vunpack.c.l.b16 %v1500
          %v2103 = vunpack.c.h.b16 %v1500
          %v2104 = vunpack.c.l.b16 %v1501
          %v2105 = vunpack.c.h.b16 %v1501
          %v2106 = vunpack.c.l.b16 %v1502
          %v2107 = vunpack.c.h.b16 %v1502
          %v2108 = vunpack.c.l.b16 %v1503
          %v2109 = vunpack.c.h.b16 %v1503
          %v2110 = vunpack.c.l.b16 %v1504
          %v2111 = vunpack.c.h.b16 %v1504
          %v2112 = vunpack.c.l.b16 %v1505
          %v2113 = vunpack.c.h.b16 %v1505
          %v2114 = vunpack.c.l.b16 %v1506
          %v2115 = vunpack.c.h.b16 %v1506
          %v2116 = vunpack.c.l.b16 %v1507
          %v2117 = vunpack.c.h.b16 %v1507
          %v2118 = vunpack.c.l.b16 %v1508
          %v2119 = vunpack.c.h.b16 %v1508
          %v2120 = vunpack.c.l.b16 %v1509
          %v2121 = vunpack.c.h.b16 %v1509
          %v2122 = vunpack.c.l.b16 %v1510
          %v2123 = vunpack.c.h.b16 %v1510
          %v2124 = vunpack.c.l.b16 %v1511
          %v2125 = vunpack.c.h.b16 %v1511
          %v2126 = vunpack.c.l.b16 %v1512
          %v2127 = vunpack.c.h.b16 %v1512
          %v2128 = vunpack.c.l.b16 %v1513
          %v2129 = vunpack.c.h.b16 %v1513
          %v2130 = vunpack.c.l.b16 %v1514
          %v2131 = vunpack.c.h.b16 %v1514
          %v2132 = vunpack.c.l.b16 %v1515
          %v2133 = vunpack.c.h.b16 %v1515
          %v2134 = vunpack.c.l.b16 %v1516
          %v2135 = vunpack.c.h.b16 %v1516
          %v2136 = vunpack.c.l.b16 %v1517
          %v2137 = vunpack.c.h.b16 %v1517
          %v2138 = vunpack.c.l.b16 %v1518
          %v2139 = vunpack.c.h.b16 %v1518
          %v2140 = vunpack.c.l.b16 %v1519
          %v2141 = vunpack.c.h.b16 %v1519
          %v2142 = vunpack.c.l.b16 %v1520
          %v2143 = vunpack.c.h.b16 %v1520
          %v2144 = vunpack.c.l.b16 %v1521
          %v2145 = vunpack.c.h.b16 %v1521
          %v2146 = vunpack.c.l.b16 %v1522
          %v2147 = vunpack.c.h.b16 %v1522
          %v2148 = vunpack.c.l.b16 %v1523
          %v2149 = vunpack.c.h.b16 %v1523
          %v2150 = vunpack.c.l.b16 %v1524
          %v2151 = vunpack.c.h.b16 %v1524
          %v2152 = vunpack.c.l.b16 %v1525
          %v2153 = vunpack.c.h.b16 %v1525
          %v2154 = vunpack.c.l.b16 %v1526
          %v2155 = vunpack.c.h.b16 %v1526
          %v2156 = vunpack.c.l.b16 %v1527
          %v2157 = vunpack.c.h.b16 %v1527
          %v2158 = vunpack.c.l.b16 %v1528
          %v2159 = vunpack.c.h.b16 %v1528
          %v2160 = vunpack.c.l.b16 %v1529
          %v2161 = vunpack.c.h.b16 %v1529
          %v2162 = vunpack.c.l.b16 %v1530
          %v2163 = vunpack.c.h.b16 %v1530
          %v2164 = vunpack.c.l.b16 %v1531
          %v2165 = vunpack.c.h.b16 %v1531
          %v2166 = vunpack.c.l.b16 %v1532
          %v2167 = vunpack.c.h.b16 %v1532
          %v2168 = vunpack.c.l.b16 %v1533
          %v2169 = vunpack.c.h.b16 %v1533
          %v2170 = vunpack.c.l.b16 %v1534
          %v2171 = vunpack.c.h.b16 %v1534
          %v2172 = vunpack.c.l.b16 %v1535
          %v2173 = vunpack.c.h.b16 %v1535
          %v2174 = vunpack.c.l.b16 %v1536
          %v2175 = vunpack.c.h.b16 %v1536
          %v2176 = vunpack.c.l.b16 %v1537
          %v2177 = vunpack.c.h.b16 %v1537
          %v2178 = vunpack.c.l.b16 %v1538
          %v2179 = vunpack.c.h.b16 %v1538
          %v2180 = vunpack.c.l.b16 %v1539
          %v2181 = vunpack.c.h.b16 %v1539
          %v2182 = vunpack.c.l.b16 %v1540
          %v2183 = vunpack.c.h.b16 %v1540
          %v2184 = vunpack.c.l.b16 %v1541
          %v2185 = vunpack.c.h.b16 %v1541
          %v2186 = vunpack.c.l.b16 %v1542
          %v2187 = vunpack.c.h.b16 %v1542
          %v2188 = vunpack.c.l.b16 %v1543
          %v2189 = vunpack.c.h.b16 %v1543
          %v2190 = vunpack.c.l.b16 %v1544
          %v2191 = vunpack.c.h.b16 %v1544
          %v2192 = vunpack.c.l.b16 %v1545
          %v2193 = vunpack.c.h.b16 %v1545
          %v2194 = vunpack.c.l.b16 %v1546
          %v2195 = vunpack.c.h.b16 %v1546
          %v2196 = vunpack.c.l.b16 %v1547
          %v2197 = vunpack.c.h.b16 %v1547
          %v2198 = vunpack.c.l.b16 %v1548
          %v2199 = vunpack.c.h.b16 %v1548
          %v2200 = vunpack.c.l.b16 %v1549
          %v2201 = vunpack.c.h.b16 %v1549
          %v2202 = vunpack.c.l.b16 %v1550
          %v2203 = vunpack.c.h.b16 %v1550
          %v2204 = vunpack.c.l.b16 %v1551
          %v2205 = vunpack.c.h.b16 %v1551
          %v2206 = vunpack.c.l.b16 %v1552
          %v2207 = vunpack.c.h.b16 %v1552
          %v2208 = vunpack.c.l.b16 %v1553
          %v2209 = vunpack.c.h.b16 %v1553
          %v2210 = vunpack.c.l.b16 %v1554
          %v2211 = vunpack.c.h.b16 %v1554
          %v2212 = vunpack.c.l.b16 %v1555
          %v2213 = vunpack.c.h.b16 %v1555
          %v2214 = vunpack.c.l.b16 %v1556
          %v2215 = vunpack.c.h.b16 %v1556
          %v2216 = vunpack.c.l.b16 %v1557
          %v2217 = vunpack.c.h.b16 %v1557
          %v2218 = vunpack.c.l.b16 %v1558
          %v2219 = vunpack.c.h.b16 %v1558
          %v2220 = vunpack.c.l.b16 %v1559
          %v2221 = vunpack.c.h.b16 %v1559
          %v2222 = vunpack.c.l.b16 %v1560
          %v2223 = vunpack.c.h.b16 %v1560
          %v2224 = vunpack.c.l.b16 %v1561
          %v2225 = vunpack.c.h.b16 %v1561
          %v2226 = vunpack.c.l.b16 %v1562
          %v2227 = vunpack.c.h.b16 %v1562
          %v2228 = vunpack.c.l.b16 %v1563
          %v2229 = vunpack.c.h.b16 %v1563
          %v2230 = vunpack.c.l.b16 %v1564
          %v2231 = vunpack.c.h.b16 %v1564
          %v2232 = vunpack.c.l.b16 %v1565
          %v2233 = vunpack.c.h.b16 %v1565
          %v2234 = vunpack.c.l.b16 %v1566
          %v2235 = vunpack.c.h.b16 %v1566
          %v2236 = vunpack.c.l.b16 %v1567
          %v2237 = vunpack.c.h.b16 %v1567
          %v2238 = vunpack.c.l.b16 %v1568
          %v2239 = vunpack.c.h.b16 %v1568
          %v2240 = vunpack.c.l.b16 %v1569
          %v2241 = vunpack.c.h.b16 %v1569
          %v2242 = vunpack.c.l.b16 %v1570
          %v2243 = vunpack.c.h.b16 %v1570
          %v2244 = vunpack.c.l.b16 %v1571
          %v2245 = vunpack.c.h.b16 %v1571
          %v2246 = vunpack.c.l.b16 %v1572
          %v2247 = vunpack.c.h.b16 %v1572
          %v2248 = vunpack.c.l.b16 %v1573
          %v2249 = vunpack.c.h.b16 %v1573
          %v2250 = vunpack.c.l.b16 %v1574
          %v2251 = vunpack.c.h.b16 %v1574
          %v2252 = vunpack.c.l.b16 %v1575
          %v2253 = vunpack.c.h.b16 %v1575
          %v2254 = vunpack.c.l.b16 %v1576
          %v2255 = vunpack.c.h.b16 %v1576
          %v2256 = vunpack.c.l.b16 %v1577
          %v2257 = vunpack.c.h.b16 %v1577
          %v2258 = vunpack.c.l.b16 %v1578
          %v2259 = vunpack.c.h.b16 %v1578
          %v2260 = vunpack.c.l.b16 %v1579
          %v2261 = vunpack.c.h.b16 %v1579
          %v2262 = vunpack.c.l.b16 %v1580
          %v2263 = vunpack.c.h.b16 %v1580
          %v2264 = vunpack.c.l.b16 %v1581
          %v2265 = vunpack.c.h.b16 %v1581
          %v2266 = vunpack.c.l.b16 %v1582
          %v2267 = vunpack.c.h.b16 %v1582
          %v2268 = vunpack.c.l.b16 %v1583
          %v2269 = vunpack.c.h.b16 %v1583
          %v2270 = vunpack.c.l.b16 %v1584
          %v2271 = vunpack.c.h.b16 %v1584
          %v2272 = vunpack.c.l.b16 %v1585
          %v2273 = vunpack.c.h.b16 %v1585
          %v2274 = vunpack.c.l.b16 %v1586
          %v2275 = vunpack.c.h.b16 %v1586
          %v2276 = vunpack.c.l.b16 %v1587
          %v2277 = vunpack.c.h.b16 %v1587
          %v2278 = vunpack.c.l.b16 %v1588
          %v2279 = vunpack.c.h.b16 %v1588
          %v2280 = vunpack.c.l.b16 %v1589
          %v2281 = vunpack.c.h.b16 %v1589
          %v2282 = vunpack.c.l.b16 %v1590
          %v2283 = vunpack.c.h.b16 %v1590
          %v2284 = vunpack.c.l.b16 %v1591
          %v2285 = vunpack.c.h.b16 %v1591
          %v2286 = vunpack.c.l.b16 %v1592
          %v2287 = vunpack.c.h.b16 %v1592
          %v2288 = vunpack.c.l.b16 %v1593
          %v2289 = vunpack.c.h.b16 %v1593
          %v2290 = vunpack.c.l.b16 %v1594
          %v2291 = vunpack.c.h.b16 %v1594
          %v2292 = vunpack.c.l.b16 %v1595
          %v2293 = vunpack.c.h.b16 %v1595
          %v2294 = vunpack.c.l.b16 %v1596
          %v2295 = vunpack.c.h.b16 %v1596
          %v2296 = vunpack.c.l.b16 %v1597
          %v2297 = vunpack.c.h.b16 %v1597
          %v2298 = vunpack.c.l.b16 %v1598
          %v2299 = vunpack.c.h.b16 %v1598
          %v2300 = vunpack.c.l.b16 %v1599
          %v2301 = vunpack.c.h.b16 %v1599
          %v2302 = vunpack.c.l.b16 %v1600
          %v2303 = vunpack.c.h.b16 %v1600
          %v2304 = vunpack.c.l.b16 %v1601
          %v2305 = vunpack.c.h.b16 %v1601
          %v2306 = vunpack.c.l.b16 %v1602
          %v2307 = vunpack.c.h.b16 %v1602
          %v2308 = vunpack.c.l.b16 %v1603
          %v2309 = vunpack.c.h.b16 %v1603
          %v2310 = vunpack.c.l.b16 %v1604
          %v2311 = vunpack.c.h.b16 %v1604
          %v2312 = vunpack.c.l.b16 %v1605
          %v2313 = vunpack.c.h.b16 %v1605
          %v2314 = vunpack.c.l.b16 %v1606
          %v2315 = vunpack.c.h.b16 %v1606
          %v2316 = vunpack.c.l.b16 %v1607
          %v2317 = vunpack.c.h.b16 %v1607
          %v2318 = vunpack.c.l.b16 %v1608
          %v2319 = vunpack.c.h.b16 %v1608
          %v2320 = vunpack.c.l.b16 %v1609
          %v2321 = vunpack.c.h.b16 %v1609
          %v2322 = vunpack.c.l.b16 %v1610
          %v2323 = vunpack.c.h.b16 %v1610
          %v2324 = vunpack.c.l.b16 %v1611
          %v2325 = vunpack.c.h.b16 %v1611
          %v2326 = vunpack.c.l.b16 %v1612
          %v2327 = vunpack.c.h.b16 %v1612
          %v2328 = vunpack.c.l.b16 %v1613
          %v2329 = vunpack.c.h.b16 %v1613
          %v2330 = vunpack.c.l.b16 %v1614
          %v2331 = vunpack.c.h.b16 %v1614
          %v2332 = vunpack.c.l.b16 %v1615
          %v2333 = vunpack.c.h.b16 %v1615
          %v2334 = vunpack.c.l.b16 %v1616
          %v2335 = vunpack.c.h.b16 %v1616
          %v2336 = vunpack.c.l.b16 %v1617
          %v2337 = vunpack.c.h.b16 %v1617
          %v2338 = vunpack.c.l.b16 %v1618
          %v2339 = vunpack.c.h.b16 %v1618
          %v2340 = vunpack.c.l.b16 %v1619
          %v2341 = vunpack.c.h.b16 %v1619
          %v2342 = vunpack.c.l.b16 %v1620
          %v2343 = vunpack.c.h.b16 %v1620
          %v2344 = vunpack.c.l.b16 %v1621
          %v2345 = vunpack.c.h.b16 %v1621
          %v2346 = vunpack.c.l.b16 %v1622
          %v2347 = vunpack.c.h.b16 %v1622
          %v2348 = vunpack.c.l.b16 %v1623
          %v2349 = vunpack.c.h.b16 %v1623
          %v2350 = vunpack.c.l.b16 %v1624
          %v2351 = vunpack.c.h.b16 %v1624
          %v2352 = vunpack.c.l.b16 %v1625
          %v2353 = vunpack.c.h.b16 %v1625
          %v2354 = vunpack.c.l.b16 %v1626
          %v2355 = vunpack.c.h.b16 %v1626
          %v2356 = vunpack.c.l.b16 %v1627
          %v2357 = vunpack.c.h.b16 %v1627
          %v2358 = vunpack.c.l.b16 %v1628
          %v2359 = vunpack.c.h.b16 %v1628
          %v2360 = vunpack.c.l.b16 %v1629
          %v2361 = vunpack.c.h.b16 %v1629
          %v2362 = vunpack.c.l.b16 %v1630
          %v2363 = vunpack.c.h.b16 %v1630
          %v2364 = vunpack.c.l.b16 %v1631
          %v2365 = vunpack.c.h.b16 %v1631
          %v2366 = vunpack.c.l.b16 %v1632
          %v2367 = vunpack.c.h.b16 %v1632
          %v2368 = vunpack.c.l.b16 %v1633
          %v2369 = vunpack.c.h.b16 %v1633
          %v2370 = vunpack.c.l.b16 %v1634
          %v2371 = vunpack.c.h.b16 %v1634
          %v2372 = vunpack.c.l.b16 %v1635
          %v2373 = vunpack.c.h.b16 %v1635
          %v2374 = vunpack.c.l.b16 %v1636
          %v2375 = vunpack.c.h.b16 %v1636
          %v2376 = vunpack.c.l.b16 %v1637
          %v2377 = vunpack.c.h.b16 %v1637
          %v2378 = vunpack.c.l.b16 %v1638
          %v2379 = vunpack.c.h.b16 %v1638
          %v2380 = vunpack.c.l.b16 %v1639
          %v2381 = vunpack.c.h.b16 %v1639
          %v2382 = vunpack.c.l.b16 %v1640
          %v2383 = vunpack.c.h.b16 %v1640
          %v2384 = vunpack.c.l.b16 %v1641
          %v2385 = vunpack.c.h.b16 %v1641
          %v2386 = vunpack.c.l.b16 %v1642
          %v2387 = vunpack.c.h.b16 %v1642
          %v2388 = vunpack.c.l.b16 %v1643
          %v2389 = vunpack.c.h.b16 %v1643
          %v2390 = vunpack.c.l.b16 %v1644
          %v2391 = vunpack.c.h.b16 %v1644
          %v2392 = vunpack.c.l.b16 %v1645
          %v2393 = vunpack.c.h.b16 %v1645
          %v2394 = vunpack.c.l.b16 %v1646
          %v2395 = vunpack.c.h.b16 %v1646
          %v2396 = vunpack.c.l.b16 %v1647
          %v2397 = vunpack.c.h.b16 %v1647
          %v2398 = vunpack.c.l.b16 %v1648
          %v2399 = vunpack.c.h.b16 %v1648
          %v2400 = vunpack.c.l.b16 %v1649
          %v2401 = vunpack.c.h.b16 %v1649
          %v2402 = vunpack.c.l.b16 %v1650
          %v2403 = vunpack.c.h.b16 %v1650
          %v2404 = vunpack.c.l.b16 %v1651
          %v2405 = vunpack.c.h.b16 %v1651
          %v2406 = vunpack.c.l.b16 %v1652
          %v2407 = vunpack.c.h.b16 %v1652
          %v2408 = vunpack.c.l.b16 %v1653
          %v2409 = vunpack.c.h.b16 %v1653
          %v2410 = vunpack.c.l.b16 %v1654
          %v2411 = vunpack.c.h.b16 %v1654
          %v2412 = vunpack.c.l.b16 %v1655
          %v2413 = vunpack.c.h.b16 %v1655
          %v2414 = vunpack.c.l.b16 %v1656
          %v2415 = vunpack.c.h.b16 %v1656
          %v2416 = vunpack.c.l.b16 %v1657
          %v2417 = vunpack.c.h.b16 %v1657
          %v2418 = vunpack.c.l.b16 %v1658
          %v2419 = vunpack.c.h.b16 %v1658
          %v2420 = vunpack.c.l.b16 %v1659
          %v2421 = vunpack.c.h.b16 %v1659
          %v2422 = vunpack.c.l.b16 %v1660
          %v2423 = vunpack.c.h.b16 %v1660
          %v2424 = vunpack.c.l.b16 %v1661
          %v2425 = vunpack.c.h.b16 %v1661
          %v2426 = vunpack.c.l.b16 %v1662
          %v2427 = vunpack.c.h.b16 %v1662
          %v2428 = vunpack.c.l.b16 %v1663
          %v2429 = vunpack.c.h.b16 %v1663
          %v2430 = vunpack.c.l.b16 %v1664
          %v2431 = vunpack.c.h.b16 %v1664
          %v2432 = vunpack.c.l.b16 %v1665
          %v2433 = vunpack.c.h.b16 %v1665
          %v2434 = vunpack.c.l.b16 %v1666
          %v2435 = vunpack.c.h.b16 %v1666
          %v2436 = vunpack.c.l.b16 %v1667
          %v2437 = vunpack.c.h.b16 %v1667
          %v2438 = vunpack.c.l.b16 %v1668
          %v2439 = vunpack.c.h.b16 %v1668
          %v2440 = vunpack.c.l.b16 %v1669
          %v2441 = vunpack.c.h.b16 %v1669
          %v2442 = vunpack.c.l.b16 %v1670
          %v2443 = vunpack.c.h.b16 %v1670
          %v2444 = vunpack.c.l.b16 %v1671
          %v2445 = vunpack.c.h.b16 %v1671
          %v2446 = vunpack.c.l.b16 %v1672
          %v2447 = vunpack.c.h.b16 %v1672
          %v2448 = vunpack.c.l.b16 %v1673
          %v2449 = vunpack.c.h.b16 %v1673
          %v2450 = vunpack.c.l.b16 %v1674
          %v2451 = vunpack.c.h.b16 %v1674
          %v2452 = vunpack.c.l.b16 %v1675
          %v2453 = vunpack.c.h.b16 %v1675
          %v2454 = vpack.c.b16 %v1946, %v1942
          %v2455 = vpack.c.b16 %v1947, %v1943
          %v2456 = vpack.c.b16 %v1948, %v1944
          %v2457 = vpack.c.b16 %v1949, %v1945
          %v2458 = vpack.c.b16 %v1954, %v1950
          %v2459 = vpack.c.b16 %v1955, %v1951
          %v2460 = vpack.c.b16 %v1956, %v1952
          %v2461 = vpack.c.b16 %v1957, %v1953
          %v2462 = vpack.c.b16 %v1962, %v1958
          %v2463 = vpack.c.b16 %v1963, %v1959
          %v2464 = vpack.c.b16 %v1964, %v1960
          %v2465 = vpack.c.b16 %v1965, %v1961
          %v2466 = vpack.c.b16 %v1970, %v1966
          %v2467 = vpack.c.b16 %v1971, %v1967
          %v2468 = vpack.c.b16 %v1972, %v1968
          %v2469 = vpack.c.b16 %v1973, %v1969
          %v2470 = vpack.c.b16 %v1978, %v1974
          %v2471 = vpack.c.b16 %v1979, %v1975
          %v2472 = vpack.c.b16 %v1980, %v1976
          %v2473 = vpack.c.b16 %v1981, %v1977
          %v2474 = vpack.c.b16 %v1986, %v1982
          %v2475 = vpack.c.b16 %v1987, %v1983
          %v2476 = vpack.c.b16 %v1988, %v1984
          %v2477 = vpack.c.b16 %v1989, %v1985
          %v2478 = vpack.c.b16 %v1994, %v1990
          %v2479 = vpack.c.b16 %v1995, %v1991
          %v2480 = vpack.c.b16 %v1996, %v1992
          %v2481 = vpack.c.b16 %v1997, %v1993
          %v2482 = vpack.c.b16 %v2002, %v1998
          %v2483 = vpack.c.b16 %v2003, %v1999
          %v2484 = vpack.c.b16 %v2004, %v2000
          %v2485 = vpack.c.b16 %v2005, %v2001
          %v2486 = vpack.c.b16 %v2010, %v2006
          %v2487 = vpack.c.b16 %v2011, %v2007
          %v2488 = vpack.c.b16 %v2012, %v2008
          %v2489 = vpack.c.b16 %v2013, %v2009
          %v2490 = vpack.c.b16 %v2018, %v2014
          %v2491 = vpack.c.b16 %v2019, %v2015
          %v2492 = vpack.c.b16 %v2020, %v2016
          %v2493 = vpack.c.b16 %v2021, %v2017
          %v2494 = vpack.c.b16 %v2026, %v2022
          %v2495 = vpack.c.b16 %v2027, %v2023
          %v2496 = vpack.c.b16 %v2028, %v2024
          %v2497 = vpack.c.b16 %v2029, %v2025
          %v2498 = vpack.c.b16 %v2034, %v2030
          %v2499 = vpack.c.b16 %v2035, %v2031
          %v2500 = vpack.c.b16 %v2036, %v2032
          %v2501 = vpack.c.b16 %v2037, %v2033
          %v2502 = vpack.c.b16 %v2042, %v2038
          %v2503 = vpack.c.b16 %v2043, %v2039
          %v2504 = vpack.c.b16 %v2044, %v2040
          %v2505 = vpack.c.b16 %v2045, %v2041
          %v2506 = vpack.c.b16 %v2050, %v2046
          %v2507 = vpack.c.b16 %v2051, %v2047
          %v2508 = vpack.c.b16 %v2052, %v2048
          %v2509 = vpack.c.b16 %v2053, %v2049
          %v2510 = vpack.c.b16 %v2058, %v2054
          %v2511 = vpack.c.b16 %v2059, %v2055
          %v2512 = vpack.c.b16 %v2060, %v2056
          %v2513 = vpack.c.b16 %v2061, %v2057
          %v2514 = vpack.c.b16 %v2066, %v2062
          %v2515 = vpack.c.b16 %v2067, %v2063
          %v2516 = vpack.c.b16 %v2068, %v2064
          %v2517 = vpack.c.b16 %v2069, %v2065
          %v2518 = vpack.c.b16 %v2074, %v2070
          %v2519 = vpack.c.b16 %v2075, %v2071
          %v2520 = vpack.c.b16 %v2076, %v2072
          %v2521 = vpack.c.b16 %v2077, %v2073
          %v2522 = vpack.c.b16 %v2082, %v2078
          %v2523 = vpack.c.b16 %v2083, %v2079
          %v2524 = vpack.c.b16 %v2084, %v2080
          %v2525 = vpack.c.b16 %v2085, %v2081
          %v2526 = vpack.c.b16 %v2090, %v2086
          %v2527 = vpack.c.b16 %v2091, %v2087
          %v2528 = vpack.c.b16 %v2092, %v2088
          %v2529 = vpack.c.b16 %v2093, %v2089
          %v2530 = vpack.c.b16 %v2098, %v2094
          %v2531 = vpack.c.b16 %v2099, %v2095
          %v2532 = vpack.c.b16 %v2100, %v2096
          %v2533 = vpack.c.b16 %v2101, %v2097
          %v2534 = vpack.c.b16 %v2106, %v2102
          %v2535 = vpack.c.b16 %v2107, %v2103
          %v2536 = vpack.c.b16 %v2108, %v2104
          %v2537 = vpack.c.b16 %v2109, %v2105
          %v2538 = vpack.c.b16 %v2114, %v2110
          %v2539 = vpack.c.b16 %v2115, %v2111
          %v2540 = vpack.c.b16 %v2116, %v2112
          %v2541 = vpack.c.b16 %v2117, %v2113
          %v2542 = vpack.c.b16 %v2122, %v2118
          %v2543 = vpack.c.b16 %v2123, %v2119
          %v2544 = vpack.c.b16 %v2124, %v2120
          %v2545 = vpack.c.b16 %v2125, %v2121
          %v2546 = vpack.c.b16 %v2130, %v2126
          %v2547 = vpack.c.b16 %v2131, %v2127
          %v2548 = vpack.c.b16 %v2132, %v2128
          %v2549 = vpack.c.b16 %v2133, %v2129
          %v2550 = vpack.c.b16 %v2138, %v2134
          %v2551 = vpack.c.b16 %v2139, %v2135
          %v2552 = vpack.c.b16 %v2140, %v2136
          %v2553 = vpack.c.b16 %v2141, %v2137
          %v2554 = vpack.c.b16 %v2146, %v2142
          %v2555 = vpack.c.b16 %v2147, %v2143
          %v2556 = vpack.c.b16 %v2148, %v2144
          %v2557 = vpack.c.b16 %v2149, %v2145
          %v2558 = vpack.c.b16 %v2154, %v2150
          %v2559 = vpack.c.b16 %v2155, %v2151
          %v2560 = vpack.c.b16 %v2156, %v2152
          %v2561 = vpack.c.b16 %v2157, %v2153
          %v2562 = vpack.c.b16 %v2162, %v2158
          %v2563 = vpack.c.b16 %v2163, %v2159
          %v2564 = vpack.c.b16 %v2164, %v2160
          %v2565 = vpack.c.b16 %v2165, %v2161
          %v2566 = vpack.c.b16 %v2170, %v2166
          %v2567 = vpack.c.b16 %v2171, %v2167
          %v2568 = vpack.c.b16 %v2172, %v2168
          %v2569 = vpack.c.b16 %v2173, %v2169
          %v2570 = vpack.c.b16 %v2178, %v2174
          %v2571 = vpack.c.b16 %v2179, %v2175
          %v2572 = vpack.c.b16 %v2180, %v2176
          %v2573 = vpack.c.b16 %v2181, %v2177
          %v2574 = vpack.c.b16 %v2186, %v2182
          %v2575 = vpack.c.b16 %v2187, %v2183
          %v2576 = vpack.c.b16 %v2188, %v2184
          %v2577 = vpack.c.b16 %v2189, %v2185
          %v2578 = vpack.c.b16 %v2194, %v2190
          %v2579 = vpack.c.b16 %v2195, %v2191
          %v2580 = vpack.c.b16 %v2196, %v2192
          %v2581 = vpack.c.b16 %v2197, %v2193
          %v2582 = vpack.c.b16 %v2202, %v2198
          %v2583 = vpack.c.b16 %v2203, %v2199
          %v2584 = vpack.c.b16 %v2204, %v2200
          %v2585 = vpack.c.b16 %v2205, %v2201
          %v2586 = vpack.c.b16 %v2210, %v2206
          %v2587 = vpack.c.b16 %v2211, %v2207
          %v2588 = vpack.c.b16 %v2212, %v2208
          %v2589 = vpack.c.b16 %v2213, %v2209
          %v2590 = vpack.c.b16 %v2218, %v2214
          %v2591 = vpack.c.b16 %v2219, %v2215
          %v2592 = vpack.c.b16 %v2220, %v2216
          %v2593 = vpack.c.b16 %v2221, %v2217
          %v2594 = vpack.c.b16 %v2226, %v2222
          %v2595 = vpack.c.b16 %v2227, %v2223
          %v2596 = vpack.c.b16 %v2228, %v2224
          %v2597 = vpack.c.b16 %v2229, %v2225
          %v2598 = vpack.c.b16 %v2234, %v2230
          %v2599 = vpack.c.b16 %v2235, %v2231
          %v2600 = vpack.c.b16 %v2236, %v2232
          %v2601 = vpack.c.b16 %v2237, %v2233
          %v2602 = vpack.c.b16 %v2242, %v2238
          %v2603 = vpack.c.b16 %v2243, %v2239
          %v2604 = vpack.c.b16 %v2244, %v2240
          %v2605 = vpack.c.b16 %v2245, %v2241
          %v2606 = vpack.c.b16 %v2250, %v2246
          %v2607 = vpack.c.b16 %v2251, %v2247
          %v2608 = vpack.c.b16 %v2252, %v2248
          %v2609 = vpack.c.b16 %v2253, %v2249
          %v2610 = vpack.c.b16 %v2258, %v2254
          %v2611 = vpack.c.b16 %v2259, %v2255
          %v2612 = vpack.c.b16 %v2260, %v2256
          %v2613 = vpack.c.b16 %v2261, %v2257
          %v2614 = vpack.c.b16 %v2266, %v2262
          %v2615 = vpack.c.b16 %v2267, %v2263
          %v2616 = vpack.c.b16 %v2268, %v2264
          %v2617 = vpack.c.b16 %v2269, %v2265
          %v2618 = vpack.c.b16 %v2274, %v2270
          %v2619 = vpack.c.b16 %v2275, %v2271
          %v2620 = vpack.c.b16 %v2276, %v2272
          %v2621 = vpack.c.b16 %v2277, %v2273
          %v2622 = vpack.c.b16 %v2282, %v2278
          %v2623 = vpack.c.b16 %v2283, %v2279
          %v2624 = vpack.c.b16 %v2284, %v2280
          %v2625 = vpack.c.b16 %v2285, %v2281
          %v2626 = vpack.c.b16 %v2290, %v2286
          %v2627 = vpack.c.b16 %v2291, %v2287
          %v2628 = vpack.c.b16 %v2292, %v2288
          %v2629 = vpack.c.b16 %v2293, %v2289
          %v2630 = vpack.c.b16 %v2298, %v2294
          %v2631 = vpack.c.b16 %v2299, %v2295
          %v2632 = vpack.c.b16 %v2300, %v2296
          %v2633 = vpack.c.b16 %v2301, %v2297
          %v2634 = vpack.c.b16 %v2306, %v2302
          %v2635 = vpack.c.b16 %v2307, %v2303
          %v2636 = vpack.c.b16 %v2308, %v2304
          %v2637 = vpack.c.b16 %v2309, %v2305
          %v2638 = vpack.c.b16 %v2314, %v2310
          %v2639 = vpack.c.b16 %v2315, %v2311
          %v2640 = vpack.c.b16 %v2316, %v2312
          %v2641 = vpack.c.b16 %v2317, %v2313
          %v2642 = vpack.c.b16 %v2322, %v2318
          %v2643 = vpack.c.b16 %v2323, %v2319
          %v2644 = vpack.c.b16 %v2324, %v2320
          %v2645 = vpack.c.b16 %v2325, %v2321
          %v2646 = vpack.c.b16 %v2330, %v2326
          %v2647 = vpack.c.b16 %v2331, %v2327
          %v2648 = vpack.c.b16 %v2332, %v2328
          %v2649 = vpack.c.b16 %v2333, %v2329
          %v2650 = vpack.c.b16 %v2338, %v2334
          %v2651 = vpack.c.b16 %v2339, %v2335
          %v2652 = vpack.c.b16 %v2340, %v2336
          %v2653 = vpack.c.b16 %v2341, %v2337
          %v2654 = vpack.c.b16 %v2346, %v2342
          %v2655 = vpack.c.b16 %v2347, %v2343
          %v2656 = vpack.c.b16 %v2348, %v2344
          %v2657 = vpack.c.b16 %v2349, %v2345
          %v2658 = vpack.c.b16 %v2354, %v2350
          %v2659 = vpack.c.b16 %v2355, %v2351
          %v2660 = vpack.c.b16 %v2356, %v2352
          %v2661 = vpack.c.b16 %v2357, %v2353
          %v2662 = vpack.c.b16 %v2362, %v2358
          %v2663 = vpack.c.b16 %v2363, %v2359
          %v2664 = vpack.c.b16 %v2364, %v2360
          %v2665 = vpack.c.b16 %v2365, %v2361
          %v2666 = vpack.c.b16 %v2370, %v2366
          %v2667 = vpack.c.b16 %v2371, %v2367
          %v2668 = vpack.c.b16 %v2372, %v2368
          %v2669 = vpack.c.b16 %v2373, %v2369
          %v2670 = vpack.c.b16 %v2378, %v2374
          %v2671 = vpack.c.b16 %v2379, %v2375
          %v2672 = vpack.c.b16 %v2380, %v2376
          %v2673 = vpack.c.b16 %v2381, %v2377
          %v2674 = vpack.c.b16 %v2386, %v2382
          %v2675 = vpack.c.b16 %v2387, %v2383
          %v2676 = vpack.c.b16 %v2388, %v2384
          %v2677 = vpack.c.b16 %v2389, %v2385
          %v2678 = vpack.c.b16 %v2394, %v2390
          %v2679 = vpack.c.b16 %v2395, %v2391
          %v2680 = vpack.c.b16 %v2396, %v2392
          %v2681 = vpack.c.b16 %v2397, %v2393
          %v2682 = vpack.c.b16 %v2402, %v2398
          %v2683 = vpack.c.b16 %v2403, %v2399
          %v2684 = vpack.c.b16 %v2404, %v2400
          %v2685 = vpack.c.b16 %v2405, %v2401
          %v2686 = vpack.c.b16 %v2410, %v2406
          %v2687 = vpack.c.b16 %v2411, %v2407
          %v2688 = vpack.c.b16 %v2412, %v2408
          %v2689 = vpack.c.b16 %v2413, %v2409
          %v2690 = vpack.c.b16 %v2418, %v2414
          %v2691 = vpack.c.b16 %v2419, %v2415
          %v2692 = vpack.c.b16 %v2420, %v2416
          %v2693 = vpack.c.b16 %v2421, %v2417
          %v2694 = vpack.c.b16 %v2426, %v2422
          %v2695 = vpack.c.b16 %v2427, %v2423
          %v2696 = vpack.c.b16 %v2428, %v2424
          %v2697 = vpack.c.b16 %v2429, %v2425
          %v2698 = vpack.c.b16 %v2434, %v2430
          %v2699 = vpack.c.b16 %v2435, %v2431
          %v2700 = vpack.c.b16 %v2436, %v2432
          %v2701 = vpack.c.b16 %v2437, %v2433
          %v2702 = vpack.c.b16 %v2442, %v2438
          %v2703 = vpack.c.b16 %v2443, %v2439
          %v2704 = vpack.c.b16 %v2444, %v2440
          %v2705 = vpack.c.b16 %v2445, %v2441
          %v2706 = vpack.c.b16 %v2450, %v2446
          %v2707 = vpack.c.b16 %v2451, %v2447
          %v2708 = vpack.c.b16 %v2452, %v2448
          %v2709 = vpack.c.b16 %v2453, %v2449
          %2966 = vmatpush.bf16.msra.mxu0 %v2482
          %2967 = vmatpush.bf16.msra.mxu0 %v2478
          %2968 = vmatpush.bf16.msra.mxu0 %v2474
          %2969 = vmatpush.bf16.msra.mxu0 %v2470
          %2970 = vmatpush.bf16.msra.mxu0 %v2466
          %2971 = vmatpush.bf16.msra.mxu0 %v2462
          %2972 = vmatpush.bf16.msra.mxu0 %v2458
          %2973 = vmatpush.bf16.msra.mxu0 %v2454
          %2974 = vmatmul.bf16.gmra.mxu0 %v1412
          %v2975 = vpop.f32.mrf.mxu0
          %v2976 = vadd.f32 %v1678, %v2975
          %v2977 = vpop.f32.mrf.mxu0
          %2978 = vdwg.mxu0
          %2979 = vmatpush.bf16.msra.mxu0 %v2514
          %2980 = vmatpush.bf16.msra.mxu0 %v2510
          %2981 = vmatpush.bf16.msra.mxu0 %v2506
          %2982 = vmatpush.bf16.msra.mxu0 %v2502
          %2983 = vmatpush.bf16.msra.mxu0 %v2498
          %2984 = vmatpush.bf16.msra.mxu0 %v2494
          %2985 = vmatpush.bf16.msra.mxu0 %v2490
          %2986 = vmatpush.bf16.msra.mxu0 %v2486
          %2987 = vmatmul.bf16.gmra.mxu0 %v1413
          %v2988 = vpop.f32.mrf.mxu0
          %v2989 = vadd.f32 %v2976, %v2988
          %v2990 = vpop.f32.mrf.mxu0
          %2991 = vdwg.mxu0
          %2992 = vmatpush.bf16.msra.mxu0 %v2546
          %2993 = vmatpush.bf16.msra.mxu0 %v2542
          %2994 = vmatpush.bf16.msra.mxu0 %v2538
          %2995 = vmatpush.bf16.msra.mxu0 %v2534
          %2996 = vmatpush.bf16.msra.mxu0 %v2530
          %2997 = vmatpush.bf16.msra.mxu0 %v2526
          %2998 = vmatpush.bf16.msra.mxu0 %v2522
          %2999 = vmatpush.bf16.msra.mxu0 %v2518
          %3000 = vmatmul.bf16.gmra.mxu0 %v1414
          %v3001 = vpop.f32.mrf.mxu0
          %v3002 = vadd.f32 %v2989, %v3001
          %v3003 = vpop.f32.mrf.mxu0
          %3004 = vdwg.mxu0
          %3005 = vmatpush.bf16.msra.mxu0 %v2578
          %3006 = vmatpush.bf16.msra.mxu0 %v2574
          %3007 = vmatpush.bf16.msra.mxu0 %v2570
          %3008 = vmatpush.bf16.msra.mxu0 %v2566
          %3009 = vmatpush.bf16.msra.mxu0 %v2562
          %3010 = vmatpush.bf16.msra.mxu0 %v2558
          %3011 = vmatpush.bf16.msra.mxu0 %v2554
          %3012 = vmatpush.bf16.msra.mxu0 %v2550
          %3013 = vmatmul.bf16.gmra.mxu0 %v1415
          %v3014 = vpop.f32.mrf.mxu0
          %v3015 = vadd.f32 %v3002, %v3014
          %v3016 = vpop.f32.mrf.mxu0
          %3017 = vdwg.mxu0
          %3018 = vmatpush.bf16.msra.mxu0 %v2610
          %3019 = vmatpush.bf16.msra.mxu0 %v2606
          %3020 = vmatpush.bf16.msra.mxu0 %v2602
          %3021 = vmatpush.bf16.msra.mxu0 %v2598
          %3022 = vmatpush.bf16.msra.mxu0 %v2594
          %3023 = vmatpush.bf16.msra.mxu0 %v2590
          %3024 = vmatpush.bf16.msra.mxu0 %v2586
          %3025 = vmatpush.bf16.msra.mxu0 %v2582
          %3026 = vmatmul.bf16.gmra.mxu0 %v1416
          %v3027 = vpop.f32.mrf.mxu0
          %v3028 = vadd.f32 %v3015, %v3027
          %v3029 = vpop.f32.mrf.mxu0
          %3030 = vdwg.mxu0
          %3031 = vmatpush.bf16.msra.mxu0 %v2642
          %3032 = vmatpush.bf16.msra.mxu0 %v2638
          %3033 = vmatpush.bf16.msra.mxu0 %v2634
          %3034 = vmatpush.bf16.msra.mxu0 %v2630
          %3035 = vmatpush.bf16.msra.mxu0 %v2626
          %3036 = vmatpush.bf16.msra.mxu0 %v2622
          %3037 = vmatpush.bf16.msra.mxu0 %v2618
          %3038 = vmatpush.bf16.msra.mxu0 %v2614
          %3039 = vmatmul.bf16.gmra.mxu0 %v1417
          %v3040 = vpop.f32.mrf.mxu0
          %v3041 = vadd.f32 %v3028, %v3040
          %v3042 = vpop.f32.mrf.mxu0
          %3043 = vdwg.mxu0
          %3044 = vmatpush.bf16.msra.mxu0 %v2674
          %3045 = vmatpush.bf16.msra.mxu0 %v2670
          %3046 = vmatpush.bf16.msra.mxu0 %v2666
          %3047 = vmatpush.bf16.msra.mxu0 %v2662
          %3048 = vmatpush.bf16.msra.mxu0 %v2658
          %3049 = vmatpush.bf16.msra.mxu0 %v2654
          %3050 = vmatpush.bf16.msra.mxu0 %v2650
          %3051 = vmatpush.bf16.msra.mxu0 %v2646
          %3052 = vmatmul.bf16.gmra.mxu0 %v1418
          %v3053 = vpop.f32.mrf.mxu0
          %v3054 = vadd.f32 %v3041, %v3053
          %v3055 = vpop.f32.mrf.mxu0
          %3056 = vdwg.mxu0
          %3057 = vmatpush.bf16.msra.mxu0 %v2706
          %3058 = vmatpush.bf16.msra.mxu0 %v2702
          %3059 = vmatpush.bf16.msra.mxu0 %v2698
          %3060 = vmatpush.bf16.msra.mxu0 %v2694
          %3061 = vmatpush.bf16.msra.mxu0 %v2690
          %3062 = vmatpush.bf16.msra.mxu0 %v2686
          %3063 = vmatpush.bf16.msra.mxu0 %v2682
          %3064 = vmatpush.bf16.msra.mxu0 %v2678
          %3065 = vmatmul.bf16.gmra.mxu0 %v1419
          %v3066 = vpop.f32.mrf.mxu0
          %v3067 = vadd.f32 %v3054, %v3066
          %v3068 = vpop.f32.mrf.mxu0
          %3069 = vdwg.mxu0
          %3070 = vmatpush.bf16.msra.mxu0 %v2483
          %3071 = vmatpush.bf16.msra.mxu0 %v2479
          %3072 = vmatpush.bf16.msra.mxu0 %v2475
          %3073 = vmatpush.bf16.msra.mxu0 %v2471
          %3074 = vmatpush.bf16.msra.mxu0 %v2467
          %3075 = vmatpush.bf16.msra.mxu0 %v2463
          %3076 = vmatpush.bf16.msra.mxu0 %v2459
          %3077 = vmatpush.bf16.msra.mxu0 %v2455
          %3078 = vmatmul.bf16.gmra.mxu0 %v1412
          %v3079 = vpop.f32.mrf.mxu0
          %v3080 = vadd.f32 %v1679, %v3079
          %v3081 = vpop.f32.mrf.mxu0
          %3082 = vdwg.mxu0
          %3083 = vmatpush.bf16.msra.mxu0 %v2515
          %3084 = vmatpush.bf16.msra.mxu0 %v2511
          %3085 = vmatpush.bf16.msra.mxu0 %v2507
          %3086 = vmatpush.bf16.msra.mxu0 %v2503
          %3087 = vmatpush.bf16.msra.mxu0 %v2499
          %3088 = vmatpush.bf16.msra.mxu0 %v2495
          %3089 = vmatpush.bf16.msra.mxu0 %v2491
          %3090 = vmatpush.bf16.msra.mxu0 %v2487
          %3091 = vmatmul.bf16.gmra.mxu0 %v1413
          %v3092 = vpop.f32.mrf.mxu0
          %v3093 = vadd.f32 %v3080, %v3092
          %v3094 = vpop.f32.mrf.mxu0
          %3095 = vdwg.mxu0
          %3096 = vmatpush.bf16.msra.mxu0 %v2547
          %3097 = vmatpush.bf16.msra.mxu0 %v2543
          %3098 = vmatpush.bf16.msra.mxu0 %v2539
          %3099 = vmatpush.bf16.msra.mxu0 %v2535
          %3100 = vmatpush.bf16.msra.mxu0 %v2531
          %3101 = vmatpush.bf16.msra.mxu0 %v2527
          %3102 = vmatpush.bf16.msra.mxu0 %v2523
          %3103 = vmatpush.bf16.msra.mxu0 %v2519
          %3104 = vmatmul.bf16.gmra.mxu0 %v1414
          %v3105 = vpop.f32.mrf.mxu0
          %v3106 = vadd.f32 %v3093, %v3105
          %v3107 = vpop.f32.mrf.mxu0
          %3108 = vdwg.mxu0
          %3109 = vmatpush.bf16.msra.mxu0 %v2579
          %3110 = vmatpush.bf16.msra.mxu0 %v2575
          %3111 = vmatpush.bf16.msra.mxu0 %v2571
          %3112 = vmatpush.bf16.msra.mxu0 %v2567
          %3113 = vmatpush.bf16.msra.mxu0 %v2563
          %3114 = vmatpush.bf16.msra.mxu0 %v2559
          %3115 = vmatpush.bf16.msra.mxu0 %v2555
          %3116 = vmatpush.bf16.msra.mxu0 %v2551
          %3117 = vmatmul.bf16.gmra.mxu0 %v1415
          %v3118 = vpop.f32.mrf.mxu0
          %v3119 = vadd.f32 %v3106, %v3118
          %v3120 = vpop.f32.mrf.mxu0
          %3121 = vdwg.mxu0
          %3122 = vmatpush.bf16.msra.mxu0 %v2611
          %3123 = vmatpush.bf16.msra.mxu0 %v2607
          %3124 = vmatpush.bf16.msra.mxu0 %v2603
          %3125 = vmatpush.bf16.msra.mxu0 %v2599
          %3126 = vmatpush.bf16.msra.mxu0 %v2595
          %3127 = vmatpush.bf16.msra.mxu0 %v2591
          %3128 = vmatpush.bf16.msra.mxu0 %v2587
          %3129 = vmatpush.bf16.msra.mxu0 %v2583
          %3130 = vmatmul.bf16.gmra.mxu0 %v1416
          %v3131 = vpop.f32.mrf.mxu0
          %v3132 = vadd.f32 %v3119, %v3131
          %v3133 = vpop.f32.mrf.mxu0
          %3134 = vdwg.mxu0
          %3135 = vmatpush.bf16.msra.mxu0 %v2643
          %3136 = vmatpush.bf16.msra.mxu0 %v2639
          %3137 = vmatpush.bf16.msra.mxu0 %v2635
          %3138 = vmatpush.bf16.msra.mxu0 %v2631
          %3139 = vmatpush.bf16.msra.mxu0 %v2627
          %3140 = vmatpush.bf16.msra.mxu0 %v2623
          %3141 = vmatpush.bf16.msra.mxu0 %v2619
          %3142 = vmatpush.bf16.msra.mxu0 %v2615
          %3143 = vmatmul.bf16.gmra.mxu0 %v1417
          %v3144 = vpop.f32.mrf.mxu0
          %v3145 = vadd.f32 %v3132, %v3144
          %v3146 = vpop.f32.mrf.mxu0
          %3147 = vdwg.mxu0
          %3148 = vmatpush.bf16.msra.mxu0 %v2675
          %3149 = vmatpush.bf16.msra.mxu0 %v2671
          %3150 = vmatpush.bf16.msra.mxu0 %v2667
          %3151 = vmatpush.bf16.msra.mxu0 %v2663
          %3152 = vmatpush.bf16.msra.mxu0 %v2659
          %3153 = vmatpush.bf16.msra.mxu0 %v2655
          %3154 = vmatpush.bf16.msra.mxu0 %v2651
          %3155 = vmatpush.bf16.msra.mxu0 %v2647
          %3156 = vmatmul.bf16.gmra.mxu0 %v1418
          %v3157 = vpop.f32.mrf.mxu0
          %v3158 = vadd.f32 %v3145, %v3157
          %v3159 = vpop.f32.mrf.mxu0
          %3160 = vdwg.mxu0
          %3161 = vmatpush.bf16.msra.mxu0 %v2707
          %3162 = vmatpush.bf16.msra.mxu0 %v2703
          %3163 = vmatpush.bf16.msra.mxu0 %v2699
          %3164 = vmatpush.bf16.msra.mxu0 %v2695
          %3165 = vmatpush.bf16.msra.mxu0 %v2691
          %3166 = vmatpush.bf16.msra.mxu0 %v2687
          %3167 = vmatpush.bf16.msra.mxu0 %v2683
          %3168 = vmatpush.bf16.msra.mxu0 %v2679
          %3169 = vmatmul.bf16.gmra.mxu0 %v1419
          %v3170 = vpop.f32.mrf.mxu0
          %v3171 = vadd.f32 %v3158, %v3170
          %v3172 = vpop.f32.mrf.mxu0
          %3173 = vdwg.mxu0
          %3174 = vmatpush.bf16.msra.mxu0 %v2484
          %3175 = vmatpush.bf16.msra.mxu0 %v2480
          %3176 = vmatpush.bf16.msra.mxu0 %v2476
          %3177 = vmatpush.bf16.msra.mxu0 %v2472
          %3178 = vmatpush.bf16.msra.mxu0 %v2468
          %3179 = vmatpush.bf16.msra.mxu0 %v2464
          %3180 = vmatpush.bf16.msra.mxu0 %v2460
          %3181 = vmatpush.bf16.msra.mxu0 %v2456
          %3182 = vmatmul.bf16.gmra.mxu0 %v1412
          %v3183 = vpop.f32.mrf.mxu0
          %v3184 = vadd.f32 %v1680, %v3183
          %v3185 = vpop.f32.mrf.mxu0
          %3186 = vdwg.mxu0
          %3187 = vmatpush.bf16.msra.mxu0 %v2516
          %3188 = vmatpush.bf16.msra.mxu0 %v2512
          %3189 = vmatpush.bf16.msra.mxu0 %v2508
          %3190 = vmatpush.bf16.msra.mxu0 %v2504
          %3191 = vmatpush.bf16.msra.mxu0 %v2500
          %3192 = vmatpush.bf16.msra.mxu0 %v2496
          %3193 = vmatpush.bf16.msra.mxu0 %v2492
          %3194 = vmatpush.bf16.msra.mxu0 %v2488
          %3195 = vmatmul.bf16.gmra.mxu0 %v1413
          %v3196 = vpop.f32.mrf.mxu0
          %v3197 = vadd.f32 %v3184, %v3196
          %v3198 = vpop.f32.mrf.mxu0
          %3199 = vdwg.mxu0
          %3200 = vmatpush.bf16.msra.mxu0 %v2548
          %3201 = vmatpush.bf16.msra.mxu0 %v2544
          %3202 = vmatpush.bf16.msra.mxu0 %v2540
          %3203 = vmatpush.bf16.msra.mxu0 %v2536
          %3204 = vmatpush.bf16.msra.mxu0 %v2532
          %3205 = vmatpush.bf16.msra.mxu0 %v2528
          %3206 = vmatpush.bf16.msra.mxu0 %v2524
          %3207 = vmatpush.bf16.msra.mxu0 %v2520
          %3208 = vmatmul.bf16.gmra.mxu0 %v1414
          %v3209 = vpop.f32.mrf.mxu0
          %v3210 = vadd.f32 %v3197, %v3209
          %v3211 = vpop.f32.mrf.mxu0
          %3212 = vdwg.mxu0
          %3213 = vmatpush.bf16.msra.mxu0 %v2580
          %3214 = vmatpush.bf16.msra.mxu0 %v2576
          %3215 = vmatpush.bf16.msra.mxu0 %v2572
          %3216 = vmatpush.bf16.msra.mxu0 %v2568
          %3217 = vmatpush.bf16.msra.mxu0 %v2564
          %3218 = vmatpush.bf16.msra.mxu0 %v2560
          %3219 = vmatpush.bf16.msra.mxu0 %v2556
          %3220 = vmatpush.bf16.msra.mxu0 %v2552
          %3221 = vmatmul.bf16.gmra.mxu0 %v1415
          %v3222 = vpop.f32.mrf.mxu0
          %v3223 = vadd.f32 %v3210, %v3222
          %v3224 = vpop.f32.mrf.mxu0
          %3225 = vdwg.mxu0
          %3226 = vmatpush.bf16.msra.mxu0 %v2612
          %3227 = vmatpush.bf16.msra.mxu0 %v2608
          %3228 = vmatpush.bf16.msra.mxu0 %v2604
          %3229 = vmatpush.bf16.msra.mxu0 %v2600
          %3230 = vmatpush.bf16.msra.mxu0 %v2596
          %3231 = vmatpush.bf16.msra.mxu0 %v2592
          %3232 = vmatpush.bf16.msra.mxu0 %v2588
          %3233 = vmatpush.bf16.msra.mxu0 %v2584
          %3234 = vmatmul.bf16.gmra.mxu0 %v1416
          %v3235 = vpop.f32.mrf.mxu0
          %v3236 = vadd.f32 %v3223, %v3235
          %v3237 = vpop.f32.mrf.mxu0
          %3238 = vdwg.mxu0
          %3239 = vmatpush.bf16.msra.mxu0 %v2644
          %3240 = vmatpush.bf16.msra.mxu0 %v2640
          %3241 = vmatpush.bf16.msra.mxu0 %v2636
          %3242 = vmatpush.bf16.msra.mxu0 %v2632
          %3243 = vmatpush.bf16.msra.mxu0 %v2628
          %3244 = vmatpush.bf16.msra.mxu0 %v2624
          %3245 = vmatpush.bf16.msra.mxu0 %v2620
          %3246 = vmatpush.bf16.msra.mxu0 %v2616
          %3247 = vmatmul.bf16.gmra.mxu0 %v1417
          %v3248 = vpop.f32.mrf.mxu0
          %v3249 = vadd.f32 %v3236, %v3248
          %v3250 = vpop.f32.mrf.mxu0
          %3251 = vdwg.mxu0
          %3252 = vmatpush.bf16.msra.mxu0 %v2676
          %3253 = vmatpush.bf16.msra.mxu0 %v2672
          %3254 = vmatpush.bf16.msra.mxu0 %v2668
          %3255 = vmatpush.bf16.msra.mxu0 %v2664
          %3256 = vmatpush.bf16.msra.mxu0 %v2660
          %3257 = vmatpush.bf16.msra.mxu0 %v2656
          %3258 = vmatpush.bf16.msra.mxu0 %v2652
          %3259 = vmatpush.bf16.msra.mxu0 %v2648
          %3260 = vmatmul.bf16.gmra.mxu0 %v1418
          %v3261 = vpop.f32.mrf.mxu0
          %v3262 = vadd.f32 %v3249, %v3261
          %v3263 = vpop.f32.mrf.mxu0
          %3264 = vdwg.mxu0
          %3265 = vmatpush.bf16.msra.mxu0 %v2708
          %3266 = vmatpush.bf16.msra.mxu0 %v2704
          %3267 = vmatpush.bf16.msra.mxu0 %v2700
          %3268 = vmatpush.bf16.msra.mxu0 %v2696
          %3269 = vmatpush.bf16.msra.mxu0 %v2692
          %3270 = vmatpush.bf16.msra.mxu0 %v2688
          %3271 = vmatpush.bf16.msra.mxu0 %v2684
          %3272 = vmatpush.bf16.msra.mxu0 %v2680
          %3273 = vmatmul.bf16.gmra.mxu0 %v1419
          %v3274 = vpop.f32.mrf.mxu0
          %v3275 = vadd.f32 %v3262, %v3274
          %v3276 = vpop.f32.mrf.mxu0
          %3277 = vdwg.mxu0
          %3278 = vmatpush.bf16.msra.mxu0 %v2485
          %3279 = vmatpush.bf16.msra.mxu0 %v2481
          %3280 = vmatpush.bf16.msra.mxu0 %v2477
          %3281 = vmatpush.bf16.msra.mxu0 %v2473
          %3282 = vmatpush.bf16.msra.mxu0 %v2469
          %3283 = vmatpush.bf16.msra.mxu0 %v2465
          %3284 = vmatpush.bf16.msra.mxu0 %v2461
          %3285 = vmatpush.bf16.msra.mxu0 %v2457
          %3286 = vmatmul.bf16.gmra.mxu0 %v1412
          %v3287 = vpop.f32.mrf.mxu0
          %v3288 = vadd.f32 %v1681, %v3287
          %v3289 = vpop.f32.mrf.mxu0
          %3290 = vdwg.mxu0
          %3291 = vmatpush.bf16.msra.mxu0 %v2517
          %3292 = vmatpush.bf16.msra.mxu0 %v2513
          %3293 = vmatpush.bf16.msra.mxu0 %v2509
          %3294 = vmatpush.bf16.msra.mxu0 %v2505
          %3295 = vmatpush.bf16.msra.mxu0 %v2501
          %3296 = vmatpush.bf16.msra.mxu0 %v2497
          %3297 = vmatpush.bf16.msra.mxu0 %v2493
          %3298 = vmatpush.bf16.msra.mxu0 %v2489
          %3299 = vmatmul.bf16.gmra.mxu0 %v1413
          %v3300 = vpop.f32.mrf.mxu0
          %v3301 = vadd.f32 %v3288, %v3300
          %v3302 = vpop.f32.mrf.mxu0
          %3303 = vdwg.mxu0
          %3304 = vmatpush.bf16.msra.mxu0 %v2549
          %3305 = vmatpush.bf16.msra.mxu0 %v2545
          %3306 = vmatpush.bf16.msra.mxu0 %v2541
          %3307 = vmatpush.bf16.msra.mxu0 %v2537
          %3308 = vmatpush.bf16.msra.mxu0 %v2533
          %3309 = vmatpush.bf16.msra.mxu0 %v2529
          %3310 = vmatpush.bf16.msra.mxu0 %v2525
          %3311 = vmatpush.bf16.msra.mxu0 %v2521
          %3312 = vmatmul.bf16.gmra.mxu0 %v1414
          %v3313 = vpop.f32.mrf.mxu0
          %v3314 = vadd.f32 %v3301, %v3313
          %v3315 = vpop.f32.mrf.mxu0
          %3316 = vdwg.mxu0
          %3317 = vmatpush.bf16.msra.mxu0 %v2581
          %3318 = vmatpush.bf16.msra.mxu0 %v2577
          %3319 = vmatpush.bf16.msra.mxu0 %v2573
          %3320 = vmatpush.bf16.msra.mxu0 %v2569
          %3321 = vmatpush.bf16.msra.mxu0 %v2565
          %3322 = vmatpush.bf16.msra.mxu0 %v2561
          %3323 = vmatpush.bf16.msra.mxu0 %v2557
          %3324 = vmatpush.bf16.msra.mxu0 %v2553
          %3325 = vmatmul.bf16.gmra.mxu0 %v1415
          %v3326 = vpop.f32.mrf.mxu0
          %v3327 = vadd.f32 %v3314, %v3326
          %v3328 = vpop.f32.mrf.mxu0
          %3329 = vdwg.mxu0
          %3330 = vmatpush.bf16.msra.mxu0 %v2613
          %3331 = vmatpush.bf16.msra.mxu0 %v2609
          %3332 = vmatpush.bf16.msra.mxu0 %v2605
          %3333 = vmatpush.bf16.msra.mxu0 %v2601
          %3334 = vmatpush.bf16.msra.mxu0 %v2597
          %3335 = vmatpush.bf16.msra.mxu0 %v2593
          %3336 = vmatpush.bf16.msra.mxu0 %v2589
          %3337 = vmatpush.bf16.msra.mxu0 %v2585
          %3338 = vmatmul.bf16.gmra.mxu0 %v1416
          %v3339 = vpop.f32.mrf.mxu0
          %v3340 = vadd.f32 %v3327, %v3339
          %v3341 = vpop.f32.mrf.mxu0
          %3342 = vdwg.mxu0
          %3343 = vmatpush.bf16.msra.mxu0 %v2645
          %3344 = vmatpush.bf16.msra.mxu0 %v2641
          %3345 = vmatpush.bf16.msra.mxu0 %v2637
          %3346 = vmatpush.bf16.msra.mxu0 %v2633
          %3347 = vmatpush.bf16.msra.mxu0 %v2629
          %3348 = vmatpush.bf16.msra.mxu0 %v2625
          %3349 = vmatpush.bf16.msra.mxu0 %v2621
          %3350 = vmatpush.bf16.msra.mxu0 %v2617
          %3351 = vmatmul.bf16.gmra.mxu0 %v1417
          %v3352 = vpop.f32.mrf.mxu0
          %v3353 = vadd.f32 %v3340, %v3352
          %v3354 = vpop.f32.mrf.mxu0
          %3355 = vdwg.mxu0
          %3356 = vmatpush.bf16.msra.mxu0 %v2677
          %3357 = vmatpush.bf16.msra.mxu0 %v2673
          %3358 = vmatpush.bf16.msra.mxu0 %v2669
          %3359 = vmatpush.bf16.msra.mxu0 %v2665
          %3360 = vmatpush.bf16.msra.mxu0 %v2661
          %3361 = vmatpush.bf16.msra.mxu0 %v2657
          %3362 = vmatpush.bf16.msra.mxu0 %v2653
          %3363 = vmatpush.bf16.msra.mxu0 %v2649
          %3364 = vmatmul.bf16.gmra.mxu0 %v1418
          %v3365 = vpop.f32.mrf.mxu0
          %v3366 = vadd.f32 %v3353, %v3365
          %v3367 = vpop.f32.mrf.mxu0
          %3368 = vdwg.mxu0
          %3369 = vmatpush.bf16.msra.mxu0 %v2709
          %3370 = vmatpush.bf16.msra.mxu0 %v2705
          %3371 = vmatpush.bf16.msra.mxu0 %v2701
          %3372 = vmatpush.bf16.msra.mxu0 %v2697
          %3373 = vmatpush.bf16.msra.mxu0 %v2693
          %3374 = vmatpush.bf16.msra.mxu0 %v2689
          %3375 = vmatpush.bf16.msra.mxu0 %v2685
          %3376 = vmatpush.bf16.msra.mxu0 %v2681
          %3377 = vmatmul.bf16.gmra.mxu0 %v1419
          %v3378 = vpop.f32.mrf.mxu0
          %v3379 = vadd.f32 %v3366, %v3378
          %v3380 = vpop.f32.mrf.mxu0
          %3381 = vdwg.mxu0
          %v3386 = vrot.slane %v3171, 4
          %v3387 = vrot.slane %v3379, 4
          %v3388 = vsel %vm1330, %v3067, %v3386
          %v3389 = vsel %vm1330, %v3275, %v3387
          %3392 = vst [vmem:[#allocation12] sm:$0xff] %v3388
          %3393 = vst [vmem:[#allocation12 + $0x8] sm:$0xff] %v3389
        $region68: #{tpu_custom_call.1} parent=39 // pred_fallthru
          _
        // Predicated region
        $region69: #{tpu_custom_call.1} parent=39 // pred_check
          %p3394 = pneg %p152
        $region70: #{tpu_custom_call.1} parent=39 // pred_check_branch
          %3396 = sbr.rel (%p3394) target = $region72
        $region71: #{tpu_custom_call.1} parent=39 // pred_region
          %3398 = vsyncadd [#allocation5], 0
          %s3400 = sshll.u32 [#allocation12], 4
          %s3401 = int_to_ptr.vmem [resolvable:$true] %s3400
          %s3402 = sshll.u32 %s5, 4
          %s3403 = int_to_ptr.hbm [resolvable:$true] %s3402
          %3405 = dma.vmem_to_hbm [thread:$0]  %s3401, 256, %s3403, [#allocation5]
        $region72: #{tpu_custom_call.1} parent=39 // pred_fallthru
          _
        // Predicated region
        $region73: #{tpu_custom_call.1} parent=39 // pred_check
          %p3406 = pneg %p152
        $region74: #{tpu_custom_call.1} parent=39 // pred_check_branch
          %3408 = sbr.rel (%p3406) target = $region76
        $region75: #{tpu_custom_call.1} parent=39 // pred_region
          %3410 = dma.done [#allocation5], 256
        $region76: #{tpu_custom_call.1} parent=39 // pred_fallthru
          _
      $region40: #{tpu_custom_call.1} parent=5 // pred_fallthru
        _
      %p3411 = scmp.le.s32.totalorder 2, %s19
      // Predicated region
      $region77: #{tpu_custom_call.1} parent=5 // pred_check
        %p3412 = pneg %p3411
      $region78: #{tpu_custom_call.1} parent=5 // pred_check_branch
        %3414 = sbr.rel (%p3412) target = $region80
      $region79: #{tpu_custom_call.1} parent=5 // pred_region
        %s3415 = ssub.s32 %s19, 2
      $region80: #{tpu_custom_call.1} parent=5 // pred_fallthru
        _
    $region6: #{tpu_custom_call.1} parent=1 // loop_footer
      %s23 = sadd.s32 1, %s19
    $region7: #{tpu_custom_call.1} parent=1 // loop_footer_branch
      %18 = sbr.rel target = $region3
    $region8: #{tpu_custom_call.1} parent=1 // loop_exit
      _
    %3416 = vsyncpa [#allocation4], 1
    %s3417 = scalar_lea.sflag [#allocation4], 1
    %3418 = vsyncpa %s3417, 1
    %3419 = vsyncpa [#allocation7], 1
    %s3420 = scalar_lea.sflag [#allocation7], 1
    %3421 = vsyncpa %s3420, 1
    %3422 = vsyncpa [#allocation10], 1
    %3423 = vsyncpa [#allocation5], 1
    %s3424 = scalar_lea.sflag [#allocation5], 1
    %3425 = vsyncpa %s3424, 1

</llo_original>
